<compile_context>
chip_gen: v5e
topology: v5e:2x2
jax: 0.10.0
libtpu: 0.0.40
codegen_flags: <defaults>
</compile_context>

<pallas_src>
import jax
import jax.numpy as jnp
from jax.experimental import pallas as pl
from jax.experimental.pallas import tpu as pltpu

N_QUBITS = 2
N_LAYERS = 6

_LANE = 128
_SUBLANE = 8

# Offsets into the packed (30,) f32 scalar-prefetch parameter vector.
_W1, _B1, _QA, _QB = 0, 8, 12, 21
_N_PARAMS = 30


def _round_up(n, m):
    return ((n + m - 1) // m) * m


# --------------------------------------------------------------------------- #
# Exact batched 2-qubit statevector simulation (used both for the wrapper-side
# fold of the quantum circuit and as the pure-JAX test reference).
# --------------------------------------------------------------------------- #
def _apply_rx(psi, theta, wire):
    c = jnp.cos(theta / 2).astype(jnp.complex64)
    s = (-1j * jnp.sin(theta / 2)).astype(jnp.complex64)
    pairs = ((0, 2), (1, 3)) if wire == 0 else ((0, 1), (2, 3))
    amps = [psi[:, k] for k in range(4)]
    for a, b in pairs:
        pa, pb = amps[a], amps[b]
        amps[a] = c * pa + s * pb
        amps[b] = s * pa + c * pb
    return jnp.stack(amps, axis=1)


def _qnode_reference(angles, weights):
    """AngleEmbedding(RX) + BasicEntanglerLayers + PauliZ expvals, exact."""
    bsz = angles.shape[0]
    psi = jnp.zeros((bsz, 4), jnp.complex64).at[:, 0].set(1.0)
    psi = _apply_rx(psi, angles[:, 0], 0)          # AngleEmbedding (RX)
    psi = _apply_rx(psi, angles[:, 1], 1)
    for l in range(weights.shape[0]):              # BasicEntanglerLayers
        psi = _apply_rx(psi, weights[l, 0], 0)
        psi = _apply_rx(psi, weights[l, 1], 1)
        psi = psi[:, jnp.array([0, 1, 3, 2])]      # CNOT(0 -> 1)
    prob = jnp.abs(psi) ** 2
    z0 = prob[:, 0] + prob[:, 1] - prob[:, 2] - prob[:, 3]
    z1 = prob[:, 0] - prob[:, 1] + prob[:, 2] - prob[:, 3]
    return jnp.stack([z0, z1], axis=1)


# --------------------------------------------------------------------------- #
# Wrapper-side folding of everything input-independent.
# --------------------------------------------------------------------------- #
_FIT_ANGLES = jnp.array([0.0, 0.5 * jnp.pi, jnp.pi], dtype=jnp.float32)


def _bilinear_coeffs(weights):
    """Exact 3x3 C0, C1 with <Z_i>(a0,a1) = [1,cos a0,sin a0] @ C_i @ [1,cos a1,sin a1].

    The embedded state only enters <Z_i> through products of half-angle cos/sin, all of
    which lie in span{1, cos a0, sin a0} (x) span{1, cos a1, sin a1}; fitting on a 3x3
    angle grid with a well-conditioned basis matrix therefore recovers C_i exactly.
    """
    a0g, a1g = jnp.meshgrid(_FIT_ANGLES, _FIT_ANGLES, indexing="ij")
    pts = jnp.stack([a0g.reshape(-1), a1g.reshape(-1)], axis=1)          # (9, 2)
    z = _qnode_reference(pts, weights)                                   # (9, 2) exact
    u = jnp.stack([jnp.ones_like(_FIT_ANGLES),
                   jnp.cos(_FIT_ANGLES),
                   jnp.sin(_FIT_ANGLES)], axis=1)                        # rows u(a_j)
    uinv = jnp.linalg.inv(u)
    c0 = uinv @ z[:, 0].reshape(3, 3) @ uinv.T
    c1 = uinv @ z[:, 1].reshape(3, 3) @ uinv.T
    return c0, c1


def _pack_params(params):
    """Fold qnodes + clayer_2 + softmax into 30 scalars (-> SMEM via scalar prefetch).

    With dw = w2[1]-w2[0], db = b2[1]-b2[0], the logit difference is
        d = u(a0)^T A u(a1) + u(a2)^T B u(a3),   u(a) = [1, cos a, sin a],
        A = dw0*C0(q1) + dw1*C1(q1) (+ db folded into A[0,0]),
        B = dw2*C0(q2) + dw3*C1(q2),
    and p1 = sigmoid(d).  Only clayer_1 and the trig remain data-dependent.
    """
    w1, b1, wq1, wq2, w2, b2 = params
    c0a, c1a = _bilinear_coeffs(wq1)
    c0b, c1b = _bilinear_coeffs(wq2)
    dw = (w2[1] - w2[0]).astype(jnp.float32)
    db = (b2[1] - b2[0]).astype(jnp.float32)
    a_mat = (dw[0] * c0a + dw[1] * c1a).at[0, 0].add(db)
    b_mat = dw[2] * c0b + dw[3] * c1b
    packed = jnp.concatenate([
        w1.reshape(-1),        # 0..7   clayer_1 weight (4,2) row-major
        b1.reshape(-1),        # 8..11  clayer_1 bias
        a_mat.reshape(-1),     # 12..20 folded qlayer_1 + clayer_2/softmax bilinear
        b_mat.reshape(-1),     # 21..29 folded qlayer_2 + clayer_2/softmax bilinear
    ]).astype(jnp.float32)
    return packed


# --------------------------------------------------------------------------- #
# Pallas kernel: one (2, TBr, 128) lane-dense batch tile of the full forward.
# --------------------------------------------------------------------------- #
def hybrid_kernel(p_ref, x_ref, out_ref):
    """p_ref: (30,) f32 SMEM (scalar-prefetched); x_ref/out_ref: (2, TBr, 128) f32 VMEM."""

    def p(i):                       # scalar parameter, broadcast against batch vregs
        return p_ref[i]

    x0 = x_ref[0, :, :]
    x1 = x_ref[1, :, :]

    # clayer_1: Linear(2 -> 4), unrolled VPU FMAs (K=2 / N=4 is far too small for the MXU).
    a = [p(_W1 + 2 * o) * x0 + p(_W1 + 2 * o + 1) * x1 + p(_B1 + o) for o in range(4)]

    # Full-angle trig of the four embedded angles: the only data-dependent piece of the
    # qnodes that survives the wrapper-side fold.  Dominant remaining VPU cost.
    c = [jnp.cos(ai) for ai in a]
    s = [jnp.sin(ai) for ai in a]

    # Folded qnode_i + clayer_2 + softmax logit difference:
    #   d = u(a0)^T A u(a1) + u(a2)^T B u(a3),  u(a) = [1, cos a, sin a].
    # Interleaved Horner-style evaluation keeps only ~3 extra (TBr,128) temporaries live.
    def bilinear(base, ci, si, cj, sj):
        t0 = p(base + 0) + p(base + 3) * ci + p(base + 6) * si
        t1 = p(base + 1) + p(base + 4) * ci + p(base + 7) * si
        t2 = p(base + 2) + p(base + 5) * ci + p(base + 8) * si
        return t0 + t1 * cj + t2 * sj

    d = bilinear(_QA, c[0], s[0], c[1], s[1]) + bilinear(_QB, c[2], s[2], c[3], s[3])

    # 2-class softmax == sigmoid of the logit difference, in tanh form: tanh runs on the
    # otherwise-idle EUP slot, no divide on the binding VALU slot, no cross-lane XLU work.
    p1 = 0.5 + 0.5 * jnp.tanh(0.5 * d)
    out_ref[1, :, :] = p1
    out_ref[0, :, :] = 1.0 - p1


# --------------------------------------------------------------------------- #
# Wrapper: layout plumbing + pallas_call.
# --------------------------------------------------------------------------- #
def hybrid_forward(x, params):
    """HybridModel forward: x (B, 2) float32 -> class probabilities (B, 2)."""
    b = x.shape[0]
    packed = _pack_params(params)   # tiny; in a real pipeline compute once per weight update

    # Tile selection:
    #  * tile_min = 8*128 batch elements = one f32 vreg per feature row (layout minimum).
    #  * tb_max = 128K elements -> 1 MiB/operand block: 4 MiB double-buffered I/O plus
    #    ~8 MiB of elementwise (trig) intermediates fits scoped VMEM on v5e/v6e/v7x and
    #    makes the ~0.35 us per-grid-step overhead negligible.
    #  * cdiv(b, 2) guarantees >= 2 grid tiles whenever possible so the "parallel" batch
    #    axis actually spans both TensorCores on v7x.
    tile_min = _LANE * _SUBLANE
    tb_max = 128 * 1024
    tb = max(tile_min, min(tb_max, _round_up(-(-b // 2), tile_min)))
    b_pad = _round_up(b, tb)
    grid = (b_pad // tb,)
    tbr = tb // _LANE

    # Feature-major, lane-dense slab: (B,2) -> (2, B_pad/128, 128) so the batch fills
    # sublanes+lanes and every load/store is an unmasked full vreg.  (Keep activations
    # feature-major end-to-end in a real pipeline and this pad/transpose pass vanishes.)
    xt = jnp.zeros((2, b_pad), jnp.float32).at[:, :b].set(x.astype(jnp.float32).T)
    xt = xt.reshape(2, b_pad // _LANE, _LANE)

    out = pl.pallas_call(
        hybrid_kernel,
        out_shape=jax.ShapeDtypeStruct((2, b_pad // _LANE, _LANE), jnp.float32),
        grid_spec=pltpu.PrefetchScalarGridSpec(
            num_scalar_prefetch=1,                                 # packed params -> SMEM once
            grid=grid,
            in_specs=[pl.BlockSpec((2, tbr, _LANE), lambda i, p: (0, i, 0))],
            out_specs=pl.BlockSpec((2, tbr, _LANE), lambda i, p: (0, i, 0)),
        ),
        compiler_params=pltpu.CompilerParams(
            dimension_semantics=("parallel",),     # independent batch tiles (2 TCs on v7x)
            vmem_limit_bytes=32 * 1024 * 1024,     # headroom over v5e's 16 MiB default
        ),
    )(packed, xt)

    return out.reshape(2, b_pad)[:, :b].T


# --------------------------------------------------------------------------- #
# Pure-JAX reference (direct statevector simulation, no folding).
# --------------------------------------------------------------------------- #
def reference_forward(x, params):
    w1, b1, wq1, wq2, w2, b2 = params
    h = x @ w1.T + b1
    qa = _qnode_reference(h[:, 0:2], wq1)
    qb = _qnode_reference(h[:, 2:4], wq2)
    logits = jnp.concatenate([qa, qb], axis=1) @ w2.T + b2
    return jax.nn.softmax(logits, axis=1)


def init_params(key):
    """PyTorch-style init: Linear U(-1/sqrt(fan_in), ..), TorchLayer weights U(0, 2*pi)."""
    k1, k2, k3, k4 = jax.random.split(key, 4)

    def linear(k, fan_in, fan_out):
        kw, kb = jax.random.split(k)
        bound = 1.0 / (fan_in ** 0.5)
        w = jax.random.uniform(kw, (fan_out, fan_in), jnp.float32, -bound, bound)
        b = jax.random.uniform(kb, (fan_out,), jnp.float32, -bound, bound)
        return w, b

    w1, b1 = linear(k1, 2, 4)                                     # clayer_1
    wq1 = jax.random.uniform(k2, (N_LAYERS, N_QUBITS), jnp.float32, 0.0, 2.0 * jnp.pi)
    wq2 = jax.random.uniform(k3, (N_LAYERS, N_QUBITS), jnp.float32, 0.0, 2.0 * jnp.pi)
    w2, b2 = linear(k4, 4, 2)                                     # clayer_2
    return (w1, b1, wq1, wq2, w2, b2)


if __name__ == "__main__":
    key = jax.random.PRNGKey(0)
    kx, kp = jax.random.split(key)

    B = 8                                  # moon dataset: 2 input features
    x = jax.random.normal(kx, (B, 2), dtype=jnp.float32)
    params = init_params(kp)

    fwd = jax.jit(hybrid_forward)
    out = jax.block_until_ready(fwd(x, params))

    ref = reference_forward(x, params)
    assert out.shape == (B, 2)
    assert bool(jnp.all(jnp.isfinite(out)))
    assert jnp.allclose(jnp.sum(out, axis=1), 1.0, atol=1e-5)
    assert jnp.allclose(out, ref, rtol=1e-4, atol=1e-5), (out, ref)

    print("KERNEL_OK")
</pallas_src>

<mosaic_0001>
module attributes {stable_mosaic.version = 11 : i64} {
  func.func @hybrid_kernel(%arg0: i32, %arg1: memref<30xf32, #tpu.memory_space<smem>>, %arg2: memref<2x8x128xf32, #tpu.memory_space<vmem>>, %arg3: memref<2x8x128xf32, #tpu.memory_space<vmem>>) attributes {dimension_semantics = [#tpu.dimension_semantics<parallel>], iteration_bounds = array<i64: 1>, scalar_prefetch = 1 : i64, scratch_operands = 0 : i64, tpu.core_type = #tpu.core_type<tc>, window_params = [{transform_indices = @transform_0, window_bounds = array<i64: 2, 8, 128>}, {transform_indices = @transform_1, window_bounds = array<i64: 2, 8, 128>}]} {
    %c0 = arith.constant 0 : index
    %c0_0 = arith.constant 0 : index
    %c0_1 = arith.constant 0 : index
    %0 = vector.load %arg2[%c0, %c0_0, %c0_1] : memref<2x8x128xf32, #tpu.memory_space<vmem>>, vector<1x8x128xf32>
    %1 = vector.shape_cast %0 : vector<1x8x128xf32> to vector<8x128xf32>
    %c1 = arith.constant 1 : index
    %c0_2 = arith.constant 0 : index
    %c0_3 = arith.constant 0 : index
    %2 = vector.load %arg2[%c1, %c0_2, %c0_3] : memref<2x8x128xf32, #tpu.memory_space<vmem>>, vector<1x8x128xf32>
    %3 = vector.shape_cast %2 : vector<1x8x128xf32> to vector<8x128xf32>
    %c0_4 = arith.constant 0 : index
    %4 = memref.load %arg1[%c0_4] : memref<30xf32, #tpu.memory_space<smem>>
    %5 = vector.broadcast %4 : f32 to vector<8x128xf32>
    %6 = arith.mulf %5, %1 : vector<8x128xf32>
    %c1_5 = arith.constant 1 : index
    %7 = memref.load %arg1[%c1_5] : memref<30xf32, #tpu.memory_space<smem>>
    %8 = vector.broadcast %7 : f32 to vector<8x128xf32>
    %9 = arith.mulf %8, %3 : vector<8x128xf32>
    %10 = arith.addf %6, %9 : vector<8x128xf32>
    %c8 = arith.constant 8 : index
    %11 = memref.load %arg1[%c8] : memref<30xf32, #tpu.memory_space<smem>>
    %12 = vector.broadcast %11 : f32 to vector<8x128xf32>
    %13 = arith.addf %10, %12 : vector<8x128xf32>
    %c2 = arith.constant 2 : index
    %14 = memref.load %arg1[%c2] : memref<30xf32, #tpu.memory_space<smem>>
    %15 = vector.broadcast %14 : f32 to vector<8x128xf32>
    %16 = arith.mulf %15, %1 : vector<8x128xf32>
    %c3 = arith.constant 3 : index
    %17 = memref.load %arg1[%c3] : memref<30xf32, #tpu.memory_space<smem>>
    %18 = vector.broadcast %17 : f32 to vector<8x128xf32>
    %19 = arith.mulf %18, %3 : vector<8x128xf32>
    %20 = arith.addf %16, %19 : vector<8x128xf32>
    %c9 = arith.constant 9 : index
    %21 = memref.load %arg1[%c9] : memref<30xf32, #tpu.memory_space<smem>>
    %22 = vector.broadcast %21 : f32 to vector<8x128xf32>
    %23 = arith.addf %20, %22 : vector<8x128xf32>
    %c4 = arith.constant 4 : index
    %24 = memref.load %arg1[%c4] : memref<30xf32, #tpu.memory_space<smem>>
    %25 = vector.broadcast %24 : f32 to vector<8x128xf32>
    %26 = arith.mulf %25, %1 : vector<8x128xf32>
    %c5 = arith.constant 5 : index
    %27 = memref.load %arg1[%c5] : memref<30xf32, #tpu.memory_space<smem>>
    %28 = vector.broadcast %27 : f32 to vector<8x128xf32>
    %29 = arith.mulf %28, %3 : vector<8x128xf32>
    %30 = arith.addf %26, %29 : vector<8x128xf32>
    %c10 = arith.constant 10 : index
    %31 = memref.load %arg1[%c10] : memref<30xf32, #tpu.memory_space<smem>>
    %32 = vector.broadcast %31 : f32 to vector<8x128xf32>
    %33 = arith.addf %30, %32 : vector<8x128xf32>
    %c6 = arith.constant 6 : index
    %34 = memref.load %arg1[%c6] : memref<30xf32, #tpu.memory_space<smem>>
    %35 = vector.broadcast %34 : f32 to vector<8x128xf32>
    %36 = arith.mulf %35, %1 : vector<8x128xf32>
    %c7 = arith.constant 7 : index
    %37 = memref.load %arg1[%c7] : memref<30xf32, #tpu.memory_space<smem>>
    %38 = vector.broadcast %37 : f32 to vector<8x128xf32>
    %39 = arith.mulf %38, %3 : vector<8x128xf32>
    %40 = arith.addf %36, %39 : vector<8x128xf32>
    %c11 = arith.constant 11 : index
    %41 = memref.load %arg1[%c11] : memref<30xf32, #tpu.memory_space<smem>>
    %42 = vector.broadcast %41 : f32 to vector<8x128xf32>
    %43 = arith.addf %40, %42 : vector<8x128xf32>
    %44 = math.cos %13 : vector<8x128xf32>
    %45 = math.cos %23 : vector<8x128xf32>
    %46 = math.cos %33 : vector<8x128xf32>
    %47 = math.cos %43 : vector<8x128xf32>
    %48 = math.sin %13 : vector<8x128xf32>
    %49 = math.sin %23 : vector<8x128xf32>
    %50 = math.sin %33 : vector<8x128xf32>
    %51 = math.sin %43 : vector<8x128xf32>
    %c12 = arith.constant 12 : index
    %52 = memref.load %arg1[%c12] : memref<30xf32, #tpu.memory_space<smem>>
    %c15 = arith.constant 15 : index
    %53 = memref.load %arg1[%c15] : memref<30xf32, #tpu.memory_space<smem>>
    %54 = vector.broadcast %53 : f32 to vector<8x128xf32>
    %55 = arith.mulf %54, %44 : vector<8x128xf32>
    %56 = vector.broadcast %52 : f32 to vector<8x128xf32>
    %57 = arith.addf %56, %55 : vector<8x128xf32>
    %c18 = arith.constant 18 : index
    %58 = memref.load %arg1[%c18] : memref<30xf32, #tpu.memory_space<smem>>
    %59 = vector.broadcast %58 : f32 to vector<8x128xf32>
    %60 = arith.mulf %59, %48 : vector<8x128xf32>
    %61 = arith.addf %57, %60 : vector<8x128xf32>
    %c13 = arith.constant 13 : index
    %62 = memref.load %arg1[%c13] : memref<30xf32, #tpu.memory_space<smem>>
    %c16 = arith.constant 16 : index
    %63 = memref.load %arg1[%c16] : memref<30xf32, #tpu.memory_space<smem>>
    %64 = vector.broadcast %63 : f32 to vector<8x128xf32>
    %65 = arith.mulf %64, %44 : vector<8x128xf32>
    %66 = vector.broadcast %62 : f32 to vector<8x128xf32>
    %67 = arith.addf %66, %65 : vector<8x128xf32>
    %c19 = arith.constant 19 : index
    %68 = memref.load %arg1[%c19] : memref<30xf32, #tpu.memory_space<smem>>
    %69 = vector.broadcast %68 : f32 to vector<8x128xf32>
    %70 = arith.mulf %69, %48 : vector<8x128xf32>
    %71 = arith.addf %67, %70 : vector<8x128xf32>
    %c14 = arith.constant 14 : index
    %72 = memref.load %arg1[%c14] : memref<30xf32, #tpu.memory_space<smem>>
    %c17 = arith.constant 17 : index
    %73 = memref.load %arg1[%c17] : memref<30xf32, #tpu.memory_space<smem>>
    %74 = vector.broadcast %73 : f32 to vector<8x128xf32>
    %75 = arith.mulf %74, %44 : vector<8x128xf32>
    %76 = vector.broadcast %72 : f32 to vector<8x128xf32>
    %77 = arith.addf %76, %75 : vector<8x128xf32>
    %c20 = arith.constant 20 : index
    %78 = memref.load %arg1[%c20] : memref<30xf32, #tpu.memory_space<smem>>
    %79 = vector.broadcast %78 : f32 to vector<8x128xf32>
    %80 = arith.mulf %79, %48 : vector<8x128xf32>
    %81 = arith.addf %77, %80 : vector<8x128xf32>
    %82 = arith.mulf %71, %45 : vector<8x128xf32>
    %83 = arith.addf %61, %82 : vector<8x128xf32>
    %84 = arith.mulf %81, %49 : vector<8x128xf32>
    %85 = arith.addf %83, %84 : vector<8x128xf32>
    %c21 = arith.constant 21 : index
    %86 = memref.load %arg1[%c21] : memref<30xf32, #tpu.memory_space<smem>>
    %c24 = arith.constant 24 : index
    %87 = memref.load %arg1[%c24] : memref<30xf32, #tpu.memory_space<smem>>
    %88 = vector.broadcast %87 : f32 to vector<8x128xf32>
    %89 = arith.mulf %88, %46 : vector<8x128xf32>
    %90 = vector.broadcast %86 : f32 to vector<8x128xf32>
    %91 = arith.addf %90, %89 : vector<8x128xf32>
    %c27 = arith.constant 27 : index
    %92 = memref.load %arg1[%c27] : memref<30xf32, #tpu.memory_space<smem>>
    %93 = vector.broadcast %92 : f32 to vector<8x128xf32>
    %94 = arith.mulf %93, %50 : vector<8x128xf32>
    %95 = arith.addf %91, %94 : vector<8x128xf32>
    %c22 = arith.constant 22 : index
    %96 = memref.load %arg1[%c22] : memref<30xf32, #tpu.memory_space<smem>>
    %c25 = arith.constant 25 : index
    %97 = memref.load %arg1[%c25] : memref<30xf32, #tpu.memory_space<smem>>
    %98 = vector.broadcast %97 : f32 to vector<8x128xf32>
    %99 = arith.mulf %98, %46 : vector<8x128xf32>
    %100 = vector.broadcast %96 : f32 to vector<8x128xf32>
    %101 = arith.addf %100, %99 : vector<8x128xf32>
    %c28 = arith.constant 28 : index
    %102 = memref.load %arg1[%c28] : memref<30xf32, #tpu.memory_space<smem>>
    %103 = vector.broadcast %102 : f32 to vector<8x128xf32>
    %104 = arith.mulf %103, %50 : vector<8x128xf32>
    %105 = arith.addf %101, %104 : vector<8x128xf32>
    %c23 = arith.constant 23 : index
    %106 = memref.load %arg1[%c23] : memref<30xf32, #tpu.memory_space<smem>>
    %c26 = arith.constant 26 : index
    %107 = memref.load %arg1[%c26] : memref<30xf32, #tpu.memory_space<smem>>
    %108 = vector.broadcast %107 : f32 to vector<8x128xf32>
    %109 = arith.mulf %108, %46 : vector<8x128xf32>
    %110 = vector.broadcast %106 : f32 to vector<8x128xf32>
    %111 = arith.addf %110, %109 : vector<8x128xf32>
    %c29 = arith.constant 29 : index
    %112 = memref.load %arg1[%c29] : memref<30xf32, #tpu.memory_space<smem>>
    %113 = vector.broadcast %112 : f32 to vector<8x128xf32>
    %114 = arith.mulf %113, %50 : vector<8x128xf32>
    %115 = arith.addf %111, %114 : vector<8x128xf32>
    %116 = arith.mulf %105, %47 : vector<8x128xf32>
    %117 = arith.addf %95, %116 : vector<8x128xf32>
    %118 = arith.mulf %115, %51 : vector<8x128xf32>
    %119 = arith.addf %117, %118 : vector<8x128xf32>
    %120 = arith.addf %85, %119 : vector<8x128xf32>
    %cst = arith.constant 5.000000e-01 : f32
    %121 = vector.broadcast %cst : f32 to vector<8x128xf32>
    %122 = arith.mulf %121, %120 : vector<8x128xf32>
    %123 = math.tanh %122 : vector<8x128xf32>
    %cst_6 = arith.constant 5.000000e-01 : f32
    %124 = vector.broadcast %cst_6 : f32 to vector<8x128xf32>
    %125 = arith.mulf %124, %123 : vector<8x128xf32>
    %cst_7 = arith.constant 5.000000e-01 : f32
    %126 = vector.broadcast %cst_7 : f32 to vector<8x128xf32>
    %127 = arith.addf %126, %125 : vector<8x128xf32>
    %c1_8 = arith.constant 1 : index
    %c0_9 = arith.constant 0 : index
    %c0_10 = arith.constant 0 : index
    %128 = vector.load %arg3[%c1_8, %c0_9, %c0_10] : memref<2x8x128xf32, #tpu.memory_space<vmem>>, vector<1x8x128xf32>
    %129 = vector.shape_cast %128 : vector<1x8x128xf32> to vector<8x128xf32>
    %130 = vector.shape_cast %127 : vector<8x128xf32> to vector<1x8x128xf32>
    tpu.vector_store %arg3[%c1_8, %c0_9, %c0_10], %130 {strides = array<i32>} : memref<2x8x128xf32, #tpu.memory_space<vmem>>, vector<1x8x128xf32>,
    %cst_11 = arith.constant 1.000000e+00 : f32
    %131 = vector.broadcast %cst_11 : f32 to vector<8x128xf32>
    %132 = arith.subf %131, %127 : vector<8x128xf32>
    %c0_12 = arith.constant 0 : index
    %c0_13 = arith.constant 0 : index
    %c0_14 = arith.constant 0 : index
    %133 = vector.load %arg3[%c0_12, %c0_13, %c0_14] : memref<2x8x128xf32, #tpu.memory_space<vmem>>, vector<1x8x128xf32>
    %134 = vector.shape_cast %133 : vector<1x8x128xf32> to vector<8x128xf32>
    %135 = vector.shape_cast %132 : vector<8x128xf32> to vector<1x8x128xf32>
    tpu.vector_store %arg3[%c0_12, %c0_13, %c0_14], %135 {strides = array<i32>} : memref<2x8x128xf32, #tpu.memory_space<vmem>>, vector<1x8x128xf32>,
    return
  }
  func.func @transform_0(%arg0: i32, %arg1: memref<30xf32, #tpu.memory_space<smem>>) -> (i32, i32, i32) {
    %c0_i32 = arith.constant 0 : i32
    %c0_i32_0 = arith.constant 0 : i32
    %c0_i32_1 = arith.constant 0 : i32
    return %c0_i32, %arg0, %c0_i32_0 : i32, i32, i32
  }
  func.func @transform_1(%arg0: i32, %arg1: memref<30xf32, #tpu.memory_space<smem>>) -> (i32, i32, i32) {
    %c0_i32 = arith.constant 0 : i32
    %c0_i32_0 = arith.constant 0 : i32
    %c0_i32_1 = arith.constant 0 : i32
    return %c0_i32, %arg0, %c0_i32_0 : i32, i32, i32
  }
}

</mosaic_0001>

<llo_original>
// kernel: custom-call.0
$region0: #{custom-call.0}
  %s0 = inlined_call_operand.hbm [shape: f32[3,3], index: 0, kind: input, shape index: {}]
  %s1 = inlined_call_operand.vmem [shape: f32[3,3], index: 1, kind: output, shape index: {0}]
  %s2 = inlined_call_operand.hbm [shape: s32[3], index: 2, kind: output, shape index: {1}]
  %s3 = inlined_call_operand.vmem [shape: s32[3], index: 3, kind: output, shape index: {2}]
  %4 = xla_tuple %s1, %s2, %s3
  $region1: #{custom-call.0} parent=0
    #allocation0 [shape = 'u8[4096]{0}', space=vmem, size = 0x1000, scoped, tag = 'operand span for operand 0']
    #allocation1 [shape = 'u8[2048]{0}', space=vmem, size = 0x800, scoped, tag = 'packed  for operand 0']
    #allocation2 [shape = 's32[1]{0}', space=sflag, size = 0x4, scoped, tag = 'scoped memory for custom-call.0']
    #allocation3 [shape = 's32[1]{0}', space=sflag, size = 0x4, scoped, tag = 'scoped memory for custom-call.0']
    #allocation4 [shape = 'u8[4096]{0}', space=vmem, size = 0x1000, scoped, tag = 'operand span for operand 1']
    #allocation5 [shape = 'u8[2048]{0}', space=vmem, size = 0x800, scoped, tag = 'packed  for operand 1']
    #allocation6 [shape = 'u8[4096]{0}', space=vmem, size = 0x1000, scoped, tag = 'operand span for operand 2']
    #allocation7 [shape = 'u8[512]{0}', space=vmem, size = 0x400, scoped, tag = 'packed  for operand 2']
    #allocation8 [shape = 'u8[4096]{0}', space=vmem, size = 0x1000, scoped, tag = 'operand span for operand 3']
    #allocation9 [shape = 'u8[512]{0}', space=vmem, size = 0x400, scoped, tag = 'packed  for operand 3']
    #allocation10 [shape = 's32[3,128]{1,0}', space=vmem, size = 0x1000, scoped, tag = 'scratch for permutations']
    %5 = vsyncpa [#allocation2], 0
    %6 = vsyncpa [#allocation3], 0
    %8 = vsyncadd [#allocation2], 0
    %s10 = sshll.u32 %s0, 4
    %s11 = int_to_ptr.hbm [resolvable:$true] %s10
    %s12 = sshll.u32 [#allocation1], 4
    %s13 = int_to_ptr.vmem [resolvable:$true] %s12
    %15 = dma.hbm_to_vmem [thread:$0]  %s11, 64, %s13, [#allocation2]
    %17 = dma.done [#allocation2], 64
    %s19 = ssub.s32 16, 1
    %v20 = vld [vmem:[#allocation1] sm:%s19]
    %21 = vst [vmem:[#allocation0] sm:%s19] %v20
    %v22 = vld [vmem:[#allocation0] sm:$0xff]
    %23 = vst [vmem:[#allocation4] sm:$0xff] %v22
    %24 = vst [vmem:[#allocation6] sm:$0x1] 0
    %v25 = vlaneseq
    %v26 = vshrl.u32 %v25, 7
    %v27 = vmov %v26
    %29 = vst [vmem:[#allocation10] sm:$0xff] %v27
    loop: start=0, step=1, limit=3
    $region3: #{custom-call.0} parent=1 // loop_pre_header
      _
    $region4: #{custom-call.0} parent=1 // loop_header
      %s31 = sphi 0, %s35
      %p32 = scmp.ge.s32.totalorder %s31, 3
    $region5: #{custom-call.0} parent=1 // loop_header_branch
      %34 = sbr.rel (%p32) target = $region9
    $region6: #{custom-call.0} parent=1 // loop_body
      %v36 = vstv %s31
      %v37 = vlaneseq
      %v38 = vshrl.u32 %v37, 7
      %v39 = vmov %v38
      %v40 = vld [vmem:[#allocation4] sm:$0xff]
      %v41 = vand.u32 2147483647, %v40
      %v43 = vstv %s31
      %vm44 = vcmp.ge.s32.totalorder %v39, %v43
      %vm45 = vcmp.lt.s32.totalorder %v39, 3
      %vm46 = vmand %vm44, %vm45
      %vm47 = vcmp.lt.f32.partialorder -inf, %v41
      %vm48 = vmand %vm46, %vm47
      %v49 = vsel %vm48, %v39, %v36
      %v50 = vsel %vm48, %v41, -inf
      %v51 = vrot.slane %v50, 1
      %v52 = vrot.slane %v49, 1
      %vm53 = vcmp.ge.f32.partialorder %v51, %v50
      %v54 = vsel %vm53, %v51, %v50
      %v55 = vsel %vm53, %v52, %v49
      %v56 = vrot.slane %v51, 1
      %v57 = vrot.slane %v52, 1
      %vm58 = vcmp.ge.f32.partialorder %v56, %v54
      %v59 = vsel %vm58, %v56, %v54
      %v60 = vsel %vm58, %v57, %v55
      %v61 = vrot.slane %v56, 1
      %v62 = vrot.slane %v57, 1
      %vm63 = vcmp.ge.f32.partialorder %v61, %v59
      %v64 = vsel %vm63, %v61, %v59
      %v65 = vsel %vm63, %v62, %v60
      %v66 = vrot.slane %v61, 1
      %v67 = vrot.slane %v62, 1
      %vm68 = vcmp.ge.f32.partialorder %v66, %v64
      %v69 = vsel %vm68, %v66, %v64
      %v70 = vsel %vm68, %v67, %v65
      %v71 = vrot.slane %v66, 1
      %v72 = vrot.slane %v67, 1
      %vm73 = vcmp.ge.f32.partialorder %v71, %v69
      %v74 = vsel %vm73, %v71, %v69
      %v75 = vsel %vm73, %v72, %v70
      %v76 = vrot.slane %v71, 1
      %v77 = vrot.slane %v72, 1
      %vm78 = vcmp.ge.f32.partialorder %v76, %v74
      %v79 = vsel %vm78, %v76, %v74
      %v80 = vsel %vm78, %v77, %v75
      %v81 = vrot.slane %v76, 1
      %v82 = vrot.slane %v77, 1
      %vm83 = vcmp.ge.f32.partialorder %v81, %v79
      %v84 = vsel %vm83, %v81, %v79
      %v85 = vsel %vm83, %v82, %v80
      %s86 = ssub.s32 128, %s31
      %87 = vrot.lane.b32.xlu0 %v85, %s86
      %v88 = vpop.permute.xlu0 %87
      %s89 = vtos %v88
      %v90 = vstv %s31
      %v91 = vlaneseq
      %v92 = vand.u32 %v91, 127
      %vm93 = vcmp.eq.s32.totalorder %v92, %v90
      %v94 = vstv %s89
      %v95 = vld [vmem:[#allocation6] ss:$0 sm:$0xff]
      %v96 = vsel %vm93, %v94, %v95
      %97 = vst [vmem:[#allocation6] sm:$0x1] %v96
      %s98 = scalar_lea.vmem [#allocation4], %s31
      %s99 = scalar_lea.vmem [#allocation4], %s89
      %v100 = vld [vmem:[%s98] ss:$0 sm:$0xff]
      %v101 = vld [vmem:[%s99] ss:$0 sm:$0xff]
      %102 = vst [vmem:[%s99] sm:$0x1] %v100
      %103 = vst [vmem:[%s98] sm:$0x1] %v101
      %s104 = scalar_lea.vmem [#allocation10], %s31
      %s105 = scalar_lea.vmem [#allocation10], %s89
      %v106 = vld [vmem:[%s104] ss:$0 sm:$0xff]
      %v107 = vld [vmem:[%s105] ss:$0 sm:$0xff]
      %108 = vst [vmem:[%s105] sm:$0x1] %v106
      %109 = vst [vmem:[%s104] sm:$0x1] %v107
      %vm110 = vcmp.ne.f32.partialorder %v101, 0.0
      %vm111 = vmand %vm93, %vm110
      %v112 = vsel %vm111, %v101, 1.0
      %v113 = vlaneseq
      %v114 = vand.u32 %v113, 127
      %v115 = vstv %s31
      %vm116 = vcmp.gt.s32.totalorder %v114, %v115
      %v117 = vsel %vm116, %v101, 0.0
      %v118 = vlaneseq
      %v119 = vshrl.u32 %v118, 7
      %v120 = vmov %v119
      %v121 = vld [vmem:[#allocation4] sm:$0xff]
      %v123 = vstv %s31
      %vm124 = vcmp.gt.s32.totalorder %v120, %v123
      %v125 = vsel %vm124, %v112, 1.0
      %v126 = vrcp.pop %v125
      %v127 = vmul.f32 %v125, %v126
      %v128 = vsub.f32 1.0, %v127
      %v129 = vmul.f32 %v126, %v128
      %v130 = vadd.f32 %v126, %v129
      %vm131 = vweird.f32 %v125
      %vm132 = vweird.f32 %v126
      %vm133 = vmor %vm131, %vm132
      %v134 = vsel %vm133, %v126, %v130
      %v135 = vand.u32 2147483647, %v125
      %vm136 = vcmp.eq.f32.partialorder %v135, 8.507059e+37
      %v137 = vand.u32 %v125, 2147483648
      %v138 = vor.u32 1.1754944e-38, %v137
      %v139 = vsel %vm136, %v138, %v134
      %v140 = vmul.f32 %v121, %v139
      %vm141 = vmand %vm124, %vm93
      %v142 = vsel %vm141, %v140, 0.0
      %143 = vadd.xlane.f32.xlu0 %v142
      %v144 = vpop.xlane.xlu0 %143
      %v145 = vmul.f32 %v144, %v117
      %v146 = vsub.f32 %v140, %v145
      %147 = vst [vmem:[#allocation4] sm:$0xff] %v146
    $region7: #{custom-call.0} parent=1 // loop_footer
      %s35 = sadd.s32 1, %s31
    $region8: #{custom-call.0} parent=1 // loop_footer_branch
      %30 = sbr.rel target = $region4
    $region9: #{custom-call.0} parent=1 // loop_exit
      _
    %v148 = vld [vmem:[#allocation10] sm:$0xff]
    %s149 = scalar_lea.vmem [#allocation10], 8
    %s150 = scalar_lea.vmem [#allocation10], 16
    %s151 = scalar_lea.vmem [#allocation10], 24
    %s152 = scalar_lea.vmem [#allocation10], 32
    %s153 = scalar_lea.vmem [#allocation10], 40
    %s154 = scalar_lea.vmem [#allocation10], 48
    %s155 = scalar_lea.vmem [#allocation10], 56
    %s156 = scalar_lea.vmem [#allocation10], 64
    %s157 = scalar_lea.vmem [#allocation10], 72
    %s158 = scalar_lea.vmem [#allocation10], 80
    %s159 = scalar_lea.vmem [#allocation10], 88
    %s160 = scalar_lea.vmem [#allocation10], 96
    %s161 = scalar_lea.vmem [#allocation10], 104
    %s162 = scalar_lea.vmem [#allocation10], 112
    %s163 = scalar_lea.vmem [#allocation10], 120
    %164 = vxpose.xlu0.b32.start [1/16] %v148, 128
    %165 = vxpose.xlu0.b32.cont [2/16] 0, 128
    %166 = vxpose.xlu0.b32.cont [3/16] 0, 128
    %167 = vxpose.xlu0.b32.cont [4/16] 0, 128
    %168 = vxpose.xlu0.b32.cont [5/16] 0, 128
    %169 = vxpose.xlu0.b32.cont [6/16] 0, 128
    %170 = vxpose.xlu0.b32.cont [7/16] 0, 128
    %171 = vxpose.xlu0.b32.cont [8/16] 0, 128
    %172 = vxpose.xlu0.b32.cont [9/16] 0, 128
    %173 = vxpose.xlu0.b32.cont [10/16] 0, 128
    %174 = vxpose.xlu0.b32.cont [11/16] 0, 128
    %175 = vxpose.xlu0.b32.cont [12/16] 0, 128
    %176 = vxpose.xlu0.b32.cont [13/16] 0, 128
    %177 = vxpose.xlu0.b32.cont [14/16] 0, 128
    %178 = vxpose.xlu0.b32.cont [15/16] 0, 128
    %179 = vxpose.xlu0.b32.end [16/16] 0, 128
    %v180 = vpop.trf.xlu0
    %v181 = vpop.trf.xlu0
    %v182 = vpop.trf.xlu0
    %v183 = vpop.trf.xlu0
    %v184 = vpop.trf.xlu0
    %v185 = vpop.trf.xlu0
    %v186 = vpop.trf.xlu0
    %v187 = vpop.trf.xlu0
    %v188 = vpop.trf.xlu0
    %v189 = vpop.trf.xlu0
    %v190 = vpop.trf.xlu0
    %v191 = vpop.trf.xlu0
    %v192 = vpop.trf.xlu0
    %v193 = vpop.trf.xlu0
    %v194 = vpop.trf.xlu0
    %v195 = vpop.trf.xlu0
    %196 = vst [vmem:[#allocation8] sm:$0x1] %v180
    %s198 = ssub.s32 16, 1
    %v199 = vld [vmem:[#allocation4] sm:%s198]
    %s201 = ssub.s32 16, 1
    %202 = vst [vmem:[#allocation5] sm:%s201] %v199
    %s204 = ssub.s32 2, 1
    %v205 = vld [vmem:[#allocation6] sm:%s204]
    %s207 = ssub.s32 2, 1
    %208 = vst [vmem:[#allocation7] sm:%s207] %v205
    %s210 = ssub.s32 2, 1
    %v211 = vld [vmem:[#allocation8] sm:%s210]
    %s213 = ssub.s32 2, 1
    %214 = vst [vmem:[#allocation9] sm:%s213] %v211
    // Predicated region
    $region10: #{custom-call.0} parent=1 // pred_check
      _
    $region11: #{custom-call.0} parent=1 // pred_check_branch
      %216 = sbr.rel (0) target = $region13
    $region12: #{custom-call.0} parent=1 // pred_region
      %p218 = scmp.gt.s32.totalorder 0, 0
      // Predicated region
      $region14: #{custom-call.0} parent=12 // pred_check
        %p219 = pneg %p218
      $region15: #{custom-call.0} parent=12 // pred_check_branch
        %221 = sbr.rel (%p219) target = $region17
      $region16: #{custom-call.0} parent=12 // pred_region
        %s222 = ssub.s32 0, 1
        %s223 = smul.u32 %s222, 8
        %s224 = scalar_lea.vmem [#allocation5], %s223
        %v225 = vld [vmem:[#allocation5] sm:$0xff]
        // While loop
        $region18: #{custom-call.0} parent=16 // loop_pre_header
          _
        $region19: #{custom-call.0} parent=16 // loop_header
          %s226 = sphi [#allocation5], %s248
          %s227 = sphi %s1, %s249
          %v228 = vphi %v225, %v250
          %s229 = ssub.s32 %s224, 64
          %p230 = scmp.gt.s32.totalorder %s226, %s229
        $region20: #{custom-call.0} parent=16 // loop_header_branch
          %232 = sbr.rel (%p230) target = $region24
        $region21: #{custom-call.0} parent=16 // loop_body
          %233 = vst [vmem:[%s227] sm:$0xff] %v228
          %v234 = vld [vmem:[%s226 + $0x8] sm:$0xff]
          %235 = vst [vmem:[%s227 + $0x8] sm:$0xff] %v234
          %v236 = vld [vmem:[%s226 + $0x10] sm:$0xff]
          %237 = vst [vmem:[%s227 + $0x10] sm:$0xff] %v236
          %v238 = vld [vmem:[%s226 + $0x18] sm:$0xff]
          %239 = vst [vmem:[%s227 + $0x18] sm:$0xff] %v238
          %v240 = vld [vmem:[%s226 + $0x20] sm:$0xff]
          %241 = vst [vmem:[%s227 + $0x20] sm:$0xff] %v240
          %v242 = vld [vmem:[%s226 + $0x28] sm:$0xff]
          %243 = vst [vmem:[%s227 + $0x28] sm:$0xff] %v242
          %v244 = vld [vmem:[%s226 + $0x30] sm:$0xff]
          %245 = vst [vmem:[%s227 + $0x30] sm:$0xff] %v244
          %v246 = vld [vmem:[%s226 + $0x38] sm:$0xff]
          %247 = vst [vmem:[%s227 + $0x38] sm:$0xff] %v246
        $region22: #{custom-call.0} parent=16 // loop_footer
          %s248 = scalar_lea.vmem %s226, 64
          %s249 = scalar_lea.vmem %s227, 64
          %v250 = vld [vmem:[%s226 + $0x40] sm:$0xff]
        $region23: #{custom-call.0} parent=16 // loop_footer_branch
          %251 = sbr.rel target = $region19
        $region24: #{custom-call.0} parent=16 // loop_exit
          _
        // While loop
        $region25: #{custom-call.0} parent=16 // loop_pre_header
          _
        $region26: #{custom-call.0} parent=16 // loop_header
          %s252 = sphi %s226, %s260
          %s253 = sphi %s227, %s261
          %v254 = vphi %v228, %v254
          %p255 = scmp.gt.s32.totalorder %s252, %s224
        $region27: #{custom-call.0} parent=16 // loop_header_branch
          %257 = sbr.rel (%p255) target = $region31
        $region28: #{custom-call.0} parent=16 // loop_body
          %v258 = vld [vmem:[%s252] sm:$0xff]
          %259 = vst [vmem:[%s253] sm:$0xff] %v258
        $region29: #{custom-call.0} parent=16 // loop_footer
          %s260 = scalar_lea.vmem %s252, 8
          %s261 = scalar_lea.vmem %s253, 8
        $region30: #{custom-call.0} parent=16 // loop_footer_branch
          %262 = sbr.rel target = $region26
        $region31: #{custom-call.0} parent=16 // loop_exit
          _
      $region17: #{custom-call.0} parent=12 // pred_fallthru
        _
      %s264 = ssub.s32 16, 1
      %s265 = smul.u32 0, 8
      %s266 = scalar_lea.vmem %s1, %s265
      %s267 = smul.u32 0, 8
      %s268 = scalar_lea.vmem [#allocation5], %s267
      %v269 = vld [vmem:[%s268] sm:%s264]
      %270 = vst [vmem:[%s266] sm:%s264] %v269
    $region13: #{custom-call.0} parent=1 // pred_fallthru
      _
    // Predicated region
    $region32: #{custom-call.0} parent=1 // pred_check
      _
    $region33: #{custom-call.0} parent=1 // pred_check_branch
      %272 = sbr.rel (0) target = $region35
    $region34: #{custom-call.0} parent=1 // pred_region
      %274 = vsyncadd [#allocation3], 0
      %s276 = sshll.u32 [#allocation7], 4
      %s277 = int_to_ptr.vmem [resolvable:$true] %s276
      %s278 = sshll.u32 %s2, 4
      %s279 = int_to_ptr.hbm [resolvable:$true] %s278
      %281 = dma.vmem_to_hbm [thread:$0]  %s277, 16, %s279, [#allocation3]
    $region35: #{custom-call.0} parent=1 // pred_fallthru
      _
    // Predicated region
    $region36: #{custom-call.0} parent=1 // pred_check
      _
    $region37: #{custom-call.0} parent=1 // pred_check_branch
      %283 = sbr.rel (0) target = $region39
    $region38: #{custom-call.0} parent=1 // pred_region
      // Predicated region
      $region40: #{custom-call.0} parent=38 // pred_check
        _
      $region41: #{custom-call.0} parent=38 // pred_check_branch
        %285 = sbr.rel (0) target = $region43
      $region42: #{custom-call.0} parent=38 // pred_region
        %p287 = scmp.gt.s32.totalorder 0, 0
        // Predicated region
        $region44: #{custom-call.0} parent=42 // pred_check
          %p288 = pneg %p287
        $region45: #{custom-call.0} parent=42 // pred_check_branch
          %290 = sbr.rel (%p288) target = $region47
        $region46: #{custom-call.0} parent=42 // pred_region
          %s291 = ssub.s32 0, 1
          %s292 = smul.u32 %s291, 8
          %s293 = scalar_lea.vmem [#allocation9], %s292
          %v294 = vld [vmem:[#allocation9] sm:$0xff]
          // While loop
          $region48: #{custom-call.0} parent=46 // loop_pre_header
            _
          $region49: #{custom-call.0} parent=46 // loop_header
            %s295 = sphi [#allocation9], %s317
            %s296 = sphi %s3, %s318
            %v297 = vphi %v294, %v319
            %s298 = ssub.s32 %s293, 64
            %p299 = scmp.gt.s32.totalorder %s295, %s298
          $region50: #{custom-call.0} parent=46 // loop_header_branch
            %301 = sbr.rel (%p299) target = $region54
          $region51: #{custom-call.0} parent=46 // loop_body
            %302 = vst [vmem:[%s296] sm:$0xff] %v297
            %v303 = vld [vmem:[%s295 + $0x8] sm:$0xff]
            %304 = vst [vmem:[%s296 + $0x8] sm:$0xff] %v303
            %v305 = vld [vmem:[%s295 + $0x10] sm:$0xff]
            %306 = vst [vmem:[%s296 + $0x10] sm:$0xff] %v305
            %v307 = vld [vmem:[%s295 + $0x18] sm:$0xff]
            %308 = vst [vmem:[%s296 + $0x18] sm:$0xff] %v307
            %v309 = vld [vmem:[%s295 + $0x20] sm:$0xff]
            %310 = vst [vmem:[%s296 + $0x20] sm:$0xff] %v309
            %v311 = vld [vmem:[%s295 + $0x28] sm:$0xff]
            %312 = vst [vmem:[%s296 + $0x28] sm:$0xff] %v311
            %v313 = vld [vmem:[%s295 + $0x30] sm:$0xff]
            %314 = vst [vmem:[%s296 + $0x30] sm:$0xff] %v313
            %v315 = vld [vmem:[%s295 + $0x38] sm:$0xff]
            %316 = vst [vmem:[%s296 + $0x38] sm:$0xff] %v315
          $region52: #{custom-call.0} parent=46 // loop_footer
            %s317 = scalar_lea.vmem %s295, 64
            %s318 = scalar_lea.vmem %s296, 64
            %v319 = vld [vmem:[%s295 + $0x40] sm:$0xff]
          $region53: #{custom-call.0} parent=46 // loop_footer_branch
            %320 = sbr.rel target = $region49
          $region54: #{custom-call.0} parent=46 // loop_exit
            _
          // While loop
          $region55: #{custom-call.0} parent=46 // loop_pre_header
            _
          $region56: #{custom-call.0} parent=46 // loop_header
            %s321 = sphi %s295, %s329
            %s322 = sphi %s296, %s330
            %v323 = vphi %v297, %v323
            %p324 = scmp.gt.s32.totalorder %s321, %s293
          $region57: #{custom-call.0} parent=46 // loop_header_branch
            %326 = sbr.rel (%p324) target = $region61
          $region58: #{custom-call.0} parent=46 // loop_body
            %v327 = vld [vmem:[%s321] sm:$0xff]
            %328 = vst [vmem:[%s322] sm:$0xff] %v327
          $region59: #{custom-call.0} parent=46 // loop_footer
            %s329 = scalar_lea.vmem %s321, 8
            %s330 = scalar_lea.vmem %s322, 8
          $region60: #{custom-call.0} parent=46 // loop_footer_branch
            %331 = sbr.rel target = $region56
          $region61: #{custom-call.0} parent=46 // loop_exit
            _
        $region47: #{custom-call.0} parent=42 // pred_fallthru
          _
        %s333 = ssub.s32 2, 1
        %s334 = smul.u32 0, 8
        %s335 = scalar_lea.vmem %s3, %s334
        %s336 = smul.u32 0, 8
        %s337 = scalar_lea.vmem [#allocation9], %s336
        %v338 = vld [vmem:[%s337] sm:%s333]
        %339 = vst [vmem:[%s335] sm:%s333] %v338
      $region43: #{custom-call.0} parent=38 // pred_fallthru
        _
    $region39: #{custom-call.0} parent=1 // pred_fallthru
      _
    // Predicated region
    $region62: #{custom-call.0} parent=1 // pred_check
      _
    $region63: #{custom-call.0} parent=1 // pred_check_branch
      %341 = sbr.rel (0) target = $region65
    $region64: #{custom-call.0} parent=1 // pred_region
      %343 = dma.done [#allocation3], 16
    $region65: #{custom-call.0} parent=1 // pred_fallthru
      _
    // Predicated region
    $region66: #{custom-call.0} parent=1 // pred_check
      _
    $region67: #{custom-call.0} parent=1 // pred_check_branch
      %345 = sbr.rel (0) target = $region69
    $region68: #{custom-call.0} parent=1 // pred_region
      _
    $region69: #{custom-call.0} parent=1 // pred_fallthru
      _
    %346 = vsyncpa [#allocation2], 1
    %347 = vsyncpa [#allocation3], 1

// kernel: custom-call.2
$region0: #{custom-call.2}
  %s0 = inlined_call_operand.vmem [shape: f32[1,3,3], index: 0, kind: input, shape index: {}]
  %s1 = inlined_call_operand.vmem [shape: f32[1,3,3], index: 1, kind: output, shape index: {}]
  $region1: #{custom-call.2} parent=0
    #allocation0 [shape = 'u8[4096]{0}', space=vmem, size = 0x1000, scoped, tag = 'operand span for operand 0']
    #allocation1 [shape = 'u8[2048]{0}', space=vmem, size = 0x800, scoped, tag = 'packed  for operand 0']
    #allocation2 [shape = 'u8[4096]{0}', space=vmem, size = 0x1000, scoped, tag = 'operand span for operand 1']
    #allocation3 [shape = 'u8[2048]{0}', space=vmem, size = 0x800, scoped, tag = 'packed  for operand 1']
    #allocation4 [shape = 'f32[3,3]{1,0}', space=vmem, size = 0x1000, scoped, tag = 'rescaled input a']
    // Predicated region
    $region2: #{custom-call.2} parent=1 // pred_check
      _
    $region3: #{custom-call.2} parent=1 // pred_check_branch
      %3 = sbr.rel (0) target = $region5
    $region4: #{custom-call.2} parent=1 // pred_region
      // Predicated region
      $region6: #{custom-call.2} parent=4 // pred_check
        _
      $region7: #{custom-call.2} parent=4 // pred_check_branch
        %5 = sbr.rel target = $region9
      $region8: #{custom-call.2} parent=4 // pred_region
        // Predicated region
        $region21: #{custom-call.2} parent=8 // pred_check
          _
        $region22: #{custom-call.2} parent=8 // pred_check_branch
          %21 = sbr.rel (0) target = $region24
        $region23: #{custom-call.2} parent=8 // pred_region
          %s23 = ssub.s32 16, 1
          loop: start=0, step=1, limit=1
          $region25: #{custom-call.2} parent=23 // loop_pre_header
            _
          $region26: #{custom-call.2} parent=23 // loop_header
            %s25 = sphi 0, %s29
            %p26 = scmp.ge.s32.totalorder %s25, 1
            %s30 = sphi %s0, %s0
            %s31 = sphi [#allocation1], [#allocation1]
          $region27: #{custom-call.2} parent=23 // loop_header_branch
            %28 = sbr.rel (%p26) target = $region31
          $region28: #{custom-call.2} parent=23 // loop_body
            %v32 = vld [vmem:[%s30] sm:%s23]
            %33 = vst [vmem:[%s31] sm:%s23] %v32
          $region29: #{custom-call.2} parent=23 // loop_footer
            %s29 = sadd.s32 1, %s25
          $region30: #{custom-call.2} parent=23 // loop_footer_branch
            %24 = sbr.rel target = $region26
          $region31: #{custom-call.2} parent=23 // loop_exit
            _
        $region24: #{custom-call.2} parent=8 // pred_fallthru
          _
      $region9: #{custom-call.2} parent=4 // pred_fallthru
        _
      // Predicated region
      $region10: #{custom-call.2} parent=4 // pred_check
        _
      $region11: #{custom-call.2} parent=4 // pred_check_branch
        %7 = sbr.rel (0) target = $region13
      $region12: #{custom-call.2} parent=4 // pred_region
        %s9 = ssub.s32 16, 1
        loop: start=0, step=1, limit=1
        $region14: #{custom-call.2} parent=12 // loop_pre_header
          _
        $region15: #{custom-call.2} parent=12 // loop_header
          %s11 = sphi 0, %s15
          %p12 = scmp.ge.s32.totalorder %s11, 1
          %s16 = sphi %s0, %s0
          %s17 = sphi [#allocation1], [#allocation1]
        $region16: #{custom-call.2} parent=12 // loop_header_branch
          %14 = sbr.rel (%p12) target = $region20
        $region17: #{custom-call.2} parent=12 // loop_body
          %v18 = vld [vmem:[%s16] sm:%s9]
          %19 = vst [vmem:[%s17] sm:%s9] %v18
        $region18: #{custom-call.2} parent=12 // loop_footer
          %s15 = sadd.s32 1, %s11
        $region19: #{custom-call.2} parent=12 // loop_footer_branch
          %10 = sbr.rel target = $region15
        $region20: #{custom-call.2} parent=12 // loop_exit
          _
      $region13: #{custom-call.2} parent=4 // pred_fallthru
        _
    $region5: #{custom-call.2} parent=1 // pred_fallthru
      _
    %34 = vnop
    %s36 = ssub.s32 16, 1
    %v37 = vld [vmem:[#allocation1] sm:%s36]
    %38 = vst [vmem:[#allocation0] sm:%s36] %v37
    %v39 = vlaneseq
    %v40 = vand.u32 %v39, 127
    %vm41 = vcmp.lt.s32.totalorder %v40, 3
    %v42 = vlaneseq
    %v43 = vshrl.u32 %v42, 7
    %vm45 = vcmp.eq.s32.totalorder %v43, %v40
    %v46 = vld [vmem:[#allocation0] sm:$0xff]
    %v47 = vsel %vm45, %v46, 0.0
    %48 = vadd.xlane.f32.xlu0 %v47
    %v49 = vpop.xlane.xlu0 %48
    %vm50 = vcmp.ge.s32.totalorder %v43, %v40
    %vm51 = vmand %vm50, %vm41
    %v52 = vsel %vm51, %v46, 0.0
    %v53 = vrcp.pop %v49
    %v54 = vmul.f32 %v49, %v53
    %v55 = vsub.f32 1.0, %v54
    %v56 = vmul.f32 %v53, %v55
    %v57 = vadd.f32 %v53, %v56
    %vm58 = vweird.f32 %v49
    %vm59 = vweird.f32 %v53
    %vm60 = vmor %vm58, %vm59
    %v61 = vsel %vm60, %v53, %v57
    %v62 = vand.u32 2147483647, %v49
    %vm63 = vcmp.eq.f32.partialorder %v62, 8.507059e+37
    %v64 = vand.u32 %v49, 2147483648
    %v65 = vor.u32 1.1754944e-38, %v64
    %v66 = vsel %vm63, %v65, %v61
    %v67 = vmul.f32 %v52, %v66
    %68 = vst [vmem:[#allocation4] sm:$0xff] %v67
    %v69 = vlaneseq
    %v70 = vand.u32 %v69, 127
    %v71 = vlaneseq
    %v72 = vshrl.u32 %v71, 7
    %vm74 = vcmp.eq.s32.totalorder %v70, %v72
    %v75 = vlaneseq
    %v76 = vand.u32 %v75, 127
    %vm77 = vcmp.eq.s32.totalorder %v76, 0
    %v78 = vsel %vm77, 1.0, -1.0
    %v79 = vsel %vm74, %v78, 0.0
    %s80 = scalar_lea.vmem [#allocation4], 1
    %v81 = vld [vmem:[%s80] ss:$0 sm:$0xff]
    %v82 = vxor.u32 %v81, 2147483648
    %v83 = vlaneseq
    %v84 = vand.u32 %v83, 127
    %vm85 = vcmp.eq.s32.totalorder %v84, 1
    %v86 = vmul.f32 %v82, %v79
    %87 = vadd.xlane.f32.xlu0 %v86
    %v88 = vpop.xlane.xlu0 %87
    %v89 = vsel %vm85, %v88, %v79
    %s90 = scalar_lea.vmem [#allocation4], 2
    %v91 = vld [vmem:[%s90] ss:$0 sm:$0xff]
    %v92 = vxor.u32 %v91, 2147483648
    %v93 = vlaneseq
    %v94 = vand.u32 %v93, 127
    %vm95 = vcmp.eq.s32.totalorder %v94, 2
    %v96 = vmul.f32 %v92, %v89
    %97 = vadd.xlane.f32.xlu0 %v96
    %v98 = vpop.xlane.xlu0 %97
    %v99 = vsel %vm95, %v98, %v89
    %v100 = vrcp.pop %v49
    %v101 = vmul.f32 %v49, %v100
    %v102 = vsub.f32 1.0, %v101
    %v103 = vmul.f32 %v100, %v102
    %v104 = vadd.f32 %v100, %v103
    %vm105 = vweird.f32 %v49
    %vm106 = vweird.f32 %v100
    %vm107 = vmor %vm105, %vm106
    %v108 = vsel %vm107, %v100, %v104
    %v109 = vand.u32 2147483647, %v49
    %vm110 = vcmp.eq.f32.partialorder %v109, 8.507059e+37
    %v111 = vand.u32 %v49, 2147483648
    %v112 = vor.u32 1.1754944e-38, %v111
    %v113 = vsel %vm110, %v112, %v108
    %v114 = vmul.f32 %v99, %v113
    %vm115 = vweird.f32 %v49
    %v116 = vsel %vm115, %v99, %v114
    %117 = vst [vmem:[#allocation2] sm:$0xff] %v116
    %s119 = ssub.s32 16, 1
    %v120 = vld [vmem:[#allocation2] sm:%s119]
    %s122 = ssub.s32 16, 1
    %123 = vst [vmem:[#allocation3] sm:%s122] %v120
    // Predicated region
    $region32: #{custom-call.2} parent=1 // pred_check
      _
    $region33: #{custom-call.2} parent=1 // pred_check_branch
      %125 = sbr.rel (0) target = $region35
    $region34: #{custom-call.2} parent=1 // pred_region
      // Predicated region
      $region36: #{custom-call.2} parent=34 // pred_check
        _
      $region37: #{custom-call.2} parent=34 // pred_check_branch
        %127 = sbr.rel target = $region39
      $region38: #{custom-call.2} parent=34 // pred_region
        // Predicated region
        $region51: #{custom-call.2} parent=38 // pred_check
          _
        $region52: #{custom-call.2} parent=38 // pred_check_branch
          %143 = sbr.rel (0) target = $region54
        $region53: #{custom-call.2} parent=38 // pred_region
          %s145 = ssub.s32 16, 1
          loop: start=0, step=1, limit=1
          $region55: #{custom-call.2} parent=53 // loop_pre_header
            _
          $region56: #{custom-call.2} parent=53 // loop_header
            %s147 = sphi 0, %s151
            %p148 = scmp.ge.s32.totalorder %s147, 1
            %s152 = sphi [#allocation3], [#allocation3]
            %s153 = sphi %s1, %s1
          $region57: #{custom-call.2} parent=53 // loop_header_branch
            %150 = sbr.rel (%p148) target = $region61
          $region58: #{custom-call.2} parent=53 // loop_body
            %v154 = vld [vmem:[%s152] sm:%s145]
            %155 = vst [vmem:[%s153] sm:%s145] %v154
          $region59: #{custom-call.2} parent=53 // loop_footer
            %s151 = sadd.s32 1, %s147
          $region60: #{custom-call.2} parent=53 // loop_footer_branch
            %146 = sbr.rel target = $region56
          $region61: #{custom-call.2} parent=53 // loop_exit
            _
        $region54: #{custom-call.2} parent=38 // pred_fallthru
          _
      $region39: #{custom-call.2} parent=34 // pred_fallthru
        _
      // Predicated region
      $region40: #{custom-call.2} parent=34 // pred_check
        _
      $region41: #{custom-call.2} parent=34 // pred_check_branch
        %129 = sbr.rel (0) target = $region43
      $region42: #{custom-call.2} parent=34 // pred_region
        %s131 = ssub.s32 16, 1
        loop: start=0, step=1, limit=1
        $region44: #{custom-call.2} parent=42 // loop_pre_header
          _
        $region45: #{custom-call.2} parent=42 // loop_header
          %s133 = sphi 0, %s137
          %p134 = scmp.ge.s32.totalorder %s133, 1
          %s138 = sphi [#allocation3], [#allocation3]
          %s139 = sphi %s1, %s1
        $region46: #{custom-call.2} parent=42 // loop_header_branch
          %136 = sbr.rel (%p134) target = $region50
        $region47: #{custom-call.2} parent=42 // loop_body
          %v140 = vld [vmem:[%s138] sm:%s131]
          %141 = vst [vmem:[%s139] sm:%s131] %v140
        $region48: #{custom-call.2} parent=42 // loop_footer
          %s137 = sadd.s32 1, %s133
        $region49: #{custom-call.2} parent=42 // loop_footer_branch
          %132 = sbr.rel target = $region45
        $region50: #{custom-call.2} parent=42 // loop_exit
          _
      $region43: #{custom-call.2} parent=34 // pred_fallthru
        _
    $region35: #{custom-call.2} parent=1 // pred_fallthru
      _
    %156 = vnop

// kernel: custom-call.1
$region0: #{custom-call.1}
  %s0 = inlined_call_operand.vmem [shape: f32[1,3,3], index: 0, kind: input, shape index: {}]
  %s1 = inlined_call_operand.vmem [shape: f32[1,3,3], index: 1, kind: output, shape index: {}]
  $region1: #{custom-call.1} parent=0
    #allocation0 [shape = 'u8[4096]{0}', space=vmem, size = 0x1000, scoped, tag = 'operand span for operand 0']
    #allocation1 [shape = 'u8[2048]{0}', space=vmem, size = 0x800, scoped, tag = 'packed  for operand 0']
    #allocation2 [shape = 'u8[4096]{0}', space=vmem, size = 0x1000, scoped, tag = 'operand span for operand 1']
    #allocation3 [shape = 'u8[2048]{0}', space=vmem, size = 0x800, scoped, tag = 'packed  for operand 1']
    #allocation4 [shape = 'f32[3,3]{1,0}', space=vmem, size = 0x1000, scoped, tag = 'rescaled input a']
    // Predicated region
    $region2: #{custom-call.1} parent=1 // pred_check
      _
    $region3: #{custom-call.1} parent=1 // pred_check_branch
      %3 = sbr.rel (0) target = $region5
    $region4: #{custom-call.1} parent=1 // pred_region
      // Predicated region
      $region6: #{custom-call.1} parent=4 // pred_check
        _
      $region7: #{custom-call.1} parent=4 // pred_check_branch
        %5 = sbr.rel target = $region9
      $region8: #{custom-call.1} parent=4 // pred_region
        // Predicated region
        $region21: #{custom-call.1} parent=8 // pred_check
          _
        $region22: #{custom-call.1} parent=8 // pred_check_branch
          %21 = sbr.rel (0) target = $region24
        $region23: #{custom-call.1} parent=8 // pred_region
          %s23 = ssub.s32 16, 1
          loop: start=0, step=1, limit=1
          $region25: #{custom-call.1} parent=23 // loop_pre_header
            _
          $region26: #{custom-call.1} parent=23 // loop_header
            %s25 = sphi 0, %s29
            %p26 = scmp.ge.s32.totalorder %s25, 1
            %s30 = sphi %s0, %s0
            %s31 = sphi [#allocation1], [#allocation1]
          $region27: #{custom-call.1} parent=23 // loop_header_branch
            %28 = sbr.rel (%p26) target = $region31
          $region28: #{custom-call.1} parent=23 // loop_body
            %v32 = vld [vmem:[%s30] sm:%s23]
            %33 = vst [vmem:[%s31] sm:%s23] %v32
          $region29: #{custom-call.1} parent=23 // loop_footer
            %s29 = sadd.s32 1, %s25
          $region30: #{custom-call.1} parent=23 // loop_footer_branch
            %24 = sbr.rel target = $region26
          $region31: #{custom-call.1} parent=23 // loop_exit
            _
        $region24: #{custom-call.1} parent=8 // pred_fallthru
          _
      $region9: #{custom-call.1} parent=4 // pred_fallthru
        _
      // Predicated region
      $region10: #{custom-call.1} parent=4 // pred_check
        _
      $region11: #{custom-call.1} parent=4 // pred_check_branch
        %7 = sbr.rel (0) target = $region13
      $region12: #{custom-call.1} parent=4 // pred_region
        %s9 = ssub.s32 16, 1
        loop: start=0, step=1, limit=1
        $region14: #{custom-call.1} parent=12 // loop_pre_header
          _
        $region15: #{custom-call.1} parent=12 // loop_header
          %s11 = sphi 0, %s15
          %p12 = scmp.ge.s32.totalorder %s11, 1
          %s16 = sphi %s0, %s0
          %s17 = sphi [#allocation1], [#allocation1]
        $region16: #{custom-call.1} parent=12 // loop_header_branch
          %14 = sbr.rel (%p12) target = $region20
        $region17: #{custom-call.1} parent=12 // loop_body
          %v18 = vld [vmem:[%s16] sm:%s9]
          %19 = vst [vmem:[%s17] sm:%s9] %v18
        $region18: #{custom-call.1} parent=12 // loop_footer
          %s15 = sadd.s32 1, %s11
        $region19: #{custom-call.1} parent=12 // loop_footer_branch
          %10 = sbr.rel target = $region15
        $region20: #{custom-call.1} parent=12 // loop_exit
          _
      $region13: #{custom-call.1} parent=4 // pred_fallthru
        _
    $region5: #{custom-call.1} parent=1 // pred_fallthru
      _
    %34 = vnop
    %s36 = ssub.s32 16, 1
    %v37 = vld [vmem:[#allocation1] sm:%s36]
    %38 = vst [vmem:[#allocation0] sm:%s36] %v37
    %v39 = vlaneseq
    %v40 = vand.u32 %v39, 127
    %vm41 = vcmp.lt.s32.totalorder %v40, 3
    %v42 = vlaneseq
    %v43 = vshrl.u32 %v42, 7
    %vm45 = vcmp.eq.s32.totalorder %v43, %v40
    %v46 = vld [vmem:[#allocation0] sm:$0xff]
    %v47 = vsel %vm45, %v46, 0.0
    %48 = vadd.xlane.f32.xlu0 %v47
    %v49 = vpop.xlane.xlu0 %48
    %vm50 = vcmp.le.s32.totalorder %v43, %v40
    %vm51 = vmand %vm50, %vm41
    %v52 = vsel %vm51, %v46, 0.0
    %v53 = vrcp.pop %v49
    %v54 = vmul.f32 %v49, %v53
    %v55 = vsub.f32 1.0, %v54
    %v56 = vmul.f32 %v53, %v55
    %v57 = vadd.f32 %v53, %v56
    %vm58 = vweird.f32 %v49
    %vm59 = vweird.f32 %v53
    %vm60 = vmor %vm58, %vm59
    %v61 = vsel %vm60, %v53, %v57
    %v62 = vand.u32 2147483647, %v49
    %vm63 = vcmp.eq.f32.partialorder %v62, 8.507059e+37
    %v64 = vand.u32 %v49, 2147483648
    %v65 = vor.u32 1.1754944e-38, %v64
    %v66 = vsel %vm63, %v65, %v61
    %v67 = vmul.f32 %v52, %v66
    %68 = vst [vmem:[#allocation4] sm:$0xff] %v67
    %v69 = vlaneseq
    %v70 = vand.u32 %v69, 127
    %v71 = vlaneseq
    %v72 = vshrl.u32 %v71, 7
    %vm74 = vcmp.eq.s32.totalorder %v70, %v72
    %v75 = vlaneseq
    %v76 = vand.u32 %v75, 127
    %vm77 = vcmp.eq.s32.totalorder %v76, 2
    %v78 = vsel %vm77, 1.0, -1.0
    %v79 = vsel %vm74, %v78, 0.0
    %s80 = scalar_lea.vmem [#allocation4], 1
    %v81 = vld [vmem:[%s80] ss:$0 sm:$0xff]
    %v82 = vxor.u32 %v81, 2147483648
    %v83 = vlaneseq
    %v84 = vand.u32 %v83, 127
    %vm85 = vcmp.eq.s32.totalorder %v84, 1
    %v86 = vmul.f32 %v82, %v79
    %87 = vadd.xlane.f32.xlu0 %v86
    %v88 = vpop.xlane.xlu0 %87
    %v89 = vsel %vm85, %v88, %v79
    %v90 = vld [vmem:[#allocation4] ss:$0 sm:$0xff]
    %v91 = vxor.u32 %v90, 2147483648
    %v92 = vlaneseq
    %v93 = vand.u32 %v92, 127
    %vm94 = vcmp.eq.s32.totalorder %v93, 0
    %v95 = vmul.f32 %v91, %v89
    %96 = vadd.xlane.f32.xlu0 %v95
    %v97 = vpop.xlane.xlu0 %96
    %v98 = vsel %vm94, %v97, %v89
    %v99 = vrcp.pop %v49
    %v100 = vmul.f32 %v49, %v99
    %v101 = vsub.f32 1.0, %v100
    %v102 = vmul.f32 %v99, %v101
    %v103 = vadd.f32 %v99, %v102
    %vm104 = vweird.f32 %v49
    %vm105 = vweird.f32 %v99
    %vm106 = vmor %vm104, %vm105
    %v107 = vsel %vm106, %v99, %v103
    %v108 = vand.u32 2147483647, %v49
    %vm109 = vcmp.eq.f32.partialorder %v108, 8.507059e+37
    %v110 = vand.u32 %v49, 2147483648
    %v111 = vor.u32 1.1754944e-38, %v110
    %v112 = vsel %vm109, %v111, %v107
    %v113 = vmul.f32 %v98, %v112
    %vm114 = vweird.f32 %v49
    %v115 = vsel %vm114, %v98, %v113
    %116 = vst [vmem:[#allocation2] sm:$0xff] %v115
    %s118 = ssub.s32 16, 1
    %v119 = vld [vmem:[#allocation2] sm:%s118]
    %s121 = ssub.s32 16, 1
    %122 = vst [vmem:[#allocation3] sm:%s121] %v119
    // Predicated region
    $region32: #{custom-call.1} parent=1 // pred_check
      _
    $region33: #{custom-call.1} parent=1 // pred_check_branch
      %124 = sbr.rel (0) target = $region35
    $region34: #{custom-call.1} parent=1 // pred_region
      // Predicated region
      $region36: #{custom-call.1} parent=34 // pred_check
        _
      $region37: #{custom-call.1} parent=34 // pred_check_branch
        %126 = sbr.rel target = $region39
      $region38: #{custom-call.1} parent=34 // pred_region
        // Predicated region
        $region51: #{custom-call.1} parent=38 // pred_check
          _
        $region52: #{custom-call.1} parent=38 // pred_check_branch
          %142 = sbr.rel (0) target = $region54
        $region53: #{custom-call.1} parent=38 // pred_region
          %s144 = ssub.s32 16, 1
          loop: start=0, step=1, limit=1
          $region55: #{custom-call.1} parent=53 // loop_pre_header
            _
          $region56: #{custom-call.1} parent=53 // loop_header
            %s146 = sphi 0, %s150
            %p147 = scmp.ge.s32.totalorder %s146, 1
            %s151 = sphi [#allocation3], [#allocation3]
            %s152 = sphi %s1, %s1
          $region57: #{custom-call.1} parent=53 // loop_header_branch
            %149 = sbr.rel (%p147) target = $region61
          $region58: #{custom-call.1} parent=53 // loop_body
            %v153 = vld [vmem:[%s151] sm:%s144]
            %154 = vst [vmem:[%s152] sm:%s144] %v153
          $region59: #{custom-call.1} parent=53 // loop_footer
            %s150 = sadd.s32 1, %s146
          $region60: #{custom-call.1} parent=53 // loop_footer_branch
            %145 = sbr.rel target = $region56
          $region61: #{custom-call.1} parent=53 // loop_exit
            _
        $region54: #{custom-call.1} parent=38 // pred_fallthru
          _
      $region39: #{custom-call.1} parent=34 // pred_fallthru
        _
      // Predicated region
      $region40: #{custom-call.1} parent=34 // pred_check
        _
      $region41: #{custom-call.1} parent=34 // pred_check_branch
        %128 = sbr.rel (0) target = $region43
      $region42: #{custom-call.1} parent=34 // pred_region
        %s130 = ssub.s32 16, 1
        loop: start=0, step=1, limit=1
        $region44: #{custom-call.1} parent=42 // loop_pre_header
          _
        $region45: #{custom-call.1} parent=42 // loop_header
          %s132 = sphi 0, %s136
          %p133 = scmp.ge.s32.totalorder %s132, 1
          %s137 = sphi [#allocation3], [#allocation3]
          %s138 = sphi %s1, %s1
        $region46: #{custom-call.1} parent=42 // loop_header_branch
          %135 = sbr.rel (%p133) target = $region50
        $region47: #{custom-call.1} parent=42 // loop_body
          %v139 = vld [vmem:[%s137] sm:%s130]
          %140 = vst [vmem:[%s138] sm:%s130] %v139
        $region48: #{custom-call.1} parent=42 // loop_footer
          %s136 = sadd.s32 1, %s132
        $region49: #{custom-call.1} parent=42 // loop_footer_branch
          %131 = sbr.rel target = $region45
        $region50: #{custom-call.1} parent=42 // loop_exit
          _
      $region43: #{custom-call.1} parent=34 // pred_fallthru
        _
    $region35: #{custom-call.1} parent=1 // pred_fallthru
      _
    %155 = vnop

// kernel: hybrid_forward.1
$region0: #{hybrid_forward.1}
  #allocation0 [shape = 'u32[]', space=smem, size = 0x4, offset = 0x4, fixed_abs, tag = 'smem constant byte address 0x4 - core index']
  #allocation1 [shape = 'u32[72,128]{1,0:T(1,128)}', space=vmem, size = 0x9000, scoped, tag = 'internal scratch']
  #allocation2 [shape = 's32[1]{0}', space=sflag, size = 0x4, scoped, tag = 'scoped memory for hybrid_forward.1']
  #allocation3 [shape = 'u8[512]{0}', space=smem, size = 0x200, scoped, tag = 'prefetched SMEM operand 0']
  %s0 = inlined_call_operand.vmem [shape: f32[30], index: 0, kind: input, shape index: {}]
  %s1 = inlined_call_operand.vmem [shape: f32[2,8,128], index: 1, kind: input, shape index: {}]
  %s2 = inlined_call_operand.vmem [shape: f32[2,8,128], index: 2, kind: output, shape index: {}]
  %s3 = sld [smem:[#allocation0]]
  $region14: #{hybrid_forward.1} parent=0
    _
  %s5 = ssub.s32 1, %s3
  %s6 = scalar_select 0, %s5, %s3
  %s8 = sshll.u32 %s0, 4
  %s9 = int_to_ptr.vmem [resolvable:$true] %s8
  %11 = dma.vmem_to_smem %s9, 16, [#allocation3], [#allocation2]
  %13 = dma.done [#allocation2], 16
  %14 = sfence
  // Predicated region
  $region2: #{hybrid_forward.1} parent=0 // pred_check
    _
  $region3: #{hybrid_forward.1} parent=0 // pred_check_branch
    %16 = sbr.rel (0) target = $region5
  $region4: #{hybrid_forward.1} parent=0 // pred_region
    _
  $region5: #{hybrid_forward.1} parent=0 // pred_fallthru
    _
  %v17 = vld [vmem:[%s1] sm:$0xff]
  %s18 = scalar_lea.vmem %s1, 8
  %v19 = vld [vmem:[%s18] sm:$0xff]
  %s20 = sld [smem:[#allocation3]]
  %v21 = vstv %s20
  %v22 = vmul.f32 %v21, %v17
  %s23 = sld [smem:[#allocation3 + $0x1]]
  %v24 = vstv %s23
  %v25 = vmul.f32 %v24, %v19
  %v26 = vadd.f32 %v22, %v25
  %s27 = sld [smem:[#allocation3 + $0x8]]
  %v28 = vstv %s27
  %v29 = vadd.f32 %v26, %v28
  %s30 = sld [smem:[#allocation3 + $0x2]]
  %v31 = vstv %s30
  %v32 = vmul.f32 %v31, %v17
  %s33 = sld [smem:[#allocation3 + $0x3]]
  %v34 = vstv %s33
  %v35 = vmul.f32 %v34, %v19
  %v36 = vadd.f32 %v32, %v35
  %s37 = sld [smem:[#allocation3 + $0x9]]
  %v38 = vstv %s37
  %v39 = vadd.f32 %v36, %v38
  %s40 = sld [smem:[#allocation3 + $0x4]]
  %v41 = vstv %s40
  %v42 = vmul.f32 %v41, %v17
  %s43 = sld [smem:[#allocation3 + $0x5]]
  %v44 = vstv %s43
  %v45 = vmul.f32 %v44, %v19
  %v46 = vadd.f32 %v42, %v45
  %s47 = sld [smem:[#allocation3 + $0xa]]
  %v48 = vstv %s47
  %v49 = vadd.f32 %v46, %v48
  %s50 = sld [smem:[#allocation3 + $0x6]]
  %v51 = vstv %s50
  %v52 = vmul.f32 %v51, %v17
  %s53 = sld [smem:[#allocation3 + $0x7]]
  %v54 = vstv %s53
  %v55 = vmul.f32 %v54, %v19
  %v56 = vadd.f32 %v52, %v55
  %s57 = sld [smem:[#allocation3 + $0xb]]
  %v58 = vstv %s57
  %v59 = vadd.f32 %v56, %v58
  %v60 = vand.u32 2147483647, %v29
  %vm61 = vcmp.le.f32.partialorder %v60, 0.7853982
  %vm62 = vcmp.lt.s32.totalorder %v29, 0
  %v63 = vand.u32 %v29, 2139095040
  %v64 = vshrl.u32 %v63, 23
  %v65 = vsub.s32 %v64, 127
  %v66 = vand.u32 2147483647, %v29
  %v67 = vand.u32 %v66, 8388607
  %v68 = vor.u32 %v67, 8388608
  %v69 = vsub.s32 0, %v68
  %v70 = vadd.s32 %v65, 1
  %vm71 = vcmp.gt.s32.totalorder %v70, 0
  %v72 = vsel %vm71, %v70, 0
  %v73 = vshrl.u32 %v72, 5
  %v74 = vand.u32 %v72, 31
  %v75 = vsub.s32 32, %v74
  %v76 = vshrl.u32 683565275, %v75
  %v77 = vshll.u32 683565275, %v74
  %v78 = vshrl.u32 2475754826, %v75
  %v79 = vor.u32 %v77, %v78
  %v80 = vshll.u32 2475754826, %v74
  %v81 = vshrl.u32 2131351028, %v75
  %v82 = vor.u32 %v80, %v81
  %v83 = vshll.u32 2131351028, %v74
  %v84 = vshrl.u32 2102212464, %v75
  %v85 = vor.u32 %v83, %v84
  %v86 = vshll.u32 2102212464, %v74
  %v87 = vshrl.u32 920167782, %v75
  %v88 = vor.u32 %v86, %v87
  %v89 = vshll.u32 920167782, %v74
  %v90 = vshrl.u32 1326507024, %v75
  %v91 = vor.u32 %v89, %v90
  %vm92 = vcmp.lt.s32.totalorder %v73, 1
  %vm93 = vcmp.lt.s32.totalorder %v73, 2
  %vm94 = vcmp.lt.s32.totalorder %v73, 3
  %vm95 = vcmp.lt.s32.totalorder %v73, 4
  %v96 = vsel %vm92, %v76, %v79
  %v97 = vsel %vm95, %v85, 2102212464
  %v98 = vsel %vm94, %v82, %v97
  %v99 = vsel %vm93, %v96, %v98
  %v100 = vsel %vm92, %v79, %v82
  %v101 = vsel %vm95, %v88, 920167782
  %v102 = vsel %vm94, %v85, %v101
  %v103 = vsel %vm93, %v100, %v102
  %v104 = vsel %vm92, %v82, %v85
  %v105 = vsel %vm95, %v91, 1326507024
  %v106 = vsel %vm94, %v88, %v105
  %v107 = vsel %vm93, %v104, %v106
  %v108 = vshll.u32 %v68, 8
  %v109 = vand.u32 %v108, 65535
  %v110 = vshrl.u32 %v108, 16
  %v111 = vand.u32 %v107, 65535
  %v112 = vshrl.u32 %v107, 16
  %v113 = vmul.u32 %v109, %v111
  %v114 = vmul.u32 %v109, %v112
  %v115 = vmul.u32 %v110, %v111
  %v116 = vmul.u32 %v110, %v112
  %v117 = vshll.u32 %v114, 16
  %v118 = vshrl.u32 %v114, 16
  %v119 = vshll.u32 %v115, 16
  %v120 = vshrl.u32 %v115, 16
  %vm121 = vc.u32 %v113, %v117
  %v122 = vsel %vm121, 1, 0
  %v123 = vadd.s32 %v113, %v117
  %v124 = vadd.s32 %v116, %v122
  %vm125 = vc.u32 %v123, %v119
  %v126 = vsel %vm125, 1, 0
  %v127 = vadd.s32 %v123, %v119
  %v128 = vadd.s32 %v124, %v126
  %v129 = vadd.s32 %v128, %v118
  %v130 = vadd.s32 %v129, %v120
  %v131 = vand.u32 %v108, 65535
  %v132 = vshrl.u32 %v108, 16
  %v133 = vand.u32 %v103, 65535
  %v134 = vshrl.u32 %v103, 16
  %v135 = vmul.u32 %v131, %v133
  %v136 = vmul.u32 %v131, %v134
  %v137 = vmul.u32 %v132, %v133
  %v138 = vmul.u32 %v132, %v134
  %v139 = vshll.u32 %v136, 16
  %v140 = vshrl.u32 %v136, 16
  %v141 = vshll.u32 %v137, 16
  %v142 = vshrl.u32 %v137, 16
  %vm143 = vc.u32 %v135, %v139
  %v144 = vsel %vm143, 1, 0
  %v145 = vadd.s32 %v135, %v139
  %v146 = vadd.s32 %v138, %v144
  %vm147 = vc.u32 %v145, %v141
  %v148 = vsel %vm147, 1, 0
  %v149 = vadd.s32 %v145, %v141
  %v150 = vadd.s32 %v146, %v148
  %v151 = vadd.s32 %v150, %v140
  %v152 = vadd.s32 %v151, %v142
  %v153 = vmul.u32 %v108, %v99
  %v154 = vadd.s32 %v130, %v149
  %vm155 = vc.u32 %v130, %v149
  %v156 = vadd.s32 %v152, 1
  %v157 = vsel %vm155, %v156, %v152
  %v158 = vadd.s32 %v153, %v157
  %v159 = vadd.s32 %v158, 536870912
  %v160 = vshrl.u32 %v159, 30
  %v161 = vshll.u32 %v160, 30
  %v162 = vsub.s32 %v158, %v161
  %vm163 = vcmp.lt.s32.totalorder %v162, 0
  %v164 = vsub.s32 0, %v162
  %v165 = vsel %vm163, %v164, %v162
  %v166 = vclz %v165
  %v167 = vsub.s32 %v166, 2
  %vm168 = vcmp.gt.s32.totalorder 0, %v167
  %v169 = vsel %vm168, 0, %v167
  %v170 = vsub.s32 32, %v169
  %v171 = vshll.u32 %v162, %v169
  %v172 = vshrl.u32 %v154, %v170
  %v173 = vor.u32 %v171, %v172
  %v174 = vsub.s32 4294967266, %v169
  %v175 = vadd.s32 %v174, 127
  %v176 = vshll.u32 %v175, 23
  %v177 = vor.u32 4788187, %v176
  %v178 = vand.u32 2147483647, %v177
  %v180 = vcvt.s32.f32 %v173
  %v181 = vmul.f32 %v180, %v178
  %v182 = vxor.u32 %v181, 2147483648
  %v183 = vsel %vm62, %v182, %v181
  %v184 = vsub.s32 4, %v160
  %v185 = vsel %vm62, %v184, %v160
  %v186 = vsel %vm61, %v29, %v183
  %v187 = vsel %vm61, 0, %v185
  %v188 = vmul.f32 %v186, %v186
  %v189 = vmul.f32 %v188, -0.001358992
  %v190 = vadd.f32 %v189, 0.041655596
  %v191 = vmul.f32 %v188, %v190
  %v192 = vadd.f32 %v191, -0.4999988
  %v193 = vmul.f32 %v188, %v192
  %v194 = vadd.f32 1.0, %v193
  %v195 = vmul.f32 %v186, %v186
  %v196 = vmul.f32 %v195, -0.00019511016
  %v197 = vadd.f32 %v196, 0.008332121
  %v198 = vmul.f32 %v195, %v197
  %v199 = vadd.f32 %v198, -0.16666654
  %v200 = vmul.f32 %v195, %v199
  %v201 = vadd.f32 %v200, 1.0
  %v202 = vmul.f32 %v201, %v186
  %vm203 = vweird.f32 %v29
  %v204 = vand.u32 %v187, 3
  %vm205 = vcmp.lt.s32.totalorder %v204, 2
  %vm206 = vcmp.eq.s32.totalorder %v204, 0
  %v207 = vxor.u32 %v202, 2147483648
  %v208 = vsel %vm206, %v194, %v207
  %vm209 = vcmp.eq.s32.totalorder %v204, 2
  %v210 = vxor.u32 %v194, 2147483648
  %v211 = vsel %vm209, %v210, %v202
  %v212 = vsel %vm205, %v208, %v211
  %v213 = vsel %vm203, nan, %v212
  %v214 = vand.u32 2147483647, %v39
  %vm215 = vcmp.le.f32.partialorder %v214, 0.7853982
  %vm216 = vcmp.lt.s32.totalorder %v39, 0
  %v217 = vand.u32 %v39, 2139095040
  %v218 = vshrl.u32 %v217, 23
  %v219 = vsub.s32 %v218, 127
  %v220 = vand.u32 2147483647, %v39
  %v221 = vand.u32 %v220, 8388607
  %v222 = vor.u32 %v221, 8388608
  %v223 = vsub.s32 0, %v222
  %v224 = vadd.s32 %v219, 1
  %vm225 = vcmp.gt.s32.totalorder %v224, 0
  %v226 = vsel %vm225, %v224, 0
  %v227 = vshrl.u32 %v226, 5
  %v228 = vand.u32 %v226, 31
  %v229 = vsub.s32 32, %v228
  %v230 = vshrl.u32 683565275, %v229
  %v231 = vshll.u32 683565275, %v228
  %v232 = vshrl.u32 2475754826, %v229
  %v233 = vor.u32 %v231, %v232
  %v234 = vshll.u32 2475754826, %v228
  %v235 = vshrl.u32 2131351028, %v229
  %v236 = vor.u32 %v234, %v235
  %v237 = vshll.u32 2131351028, %v228
  %v238 = vshrl.u32 2102212464, %v229
  %v239 = vor.u32 %v237, %v238
  %v240 = vshll.u32 2102212464, %v228
  %v241 = vshrl.u32 920167782, %v229
  %v242 = vor.u32 %v240, %v241
  %v243 = vshll.u32 920167782, %v228
  %v244 = vshrl.u32 1326507024, %v229
  %v245 = vor.u32 %v243, %v244
  %vm246 = vcmp.lt.s32.totalorder %v227, 1
  %vm247 = vcmp.lt.s32.totalorder %v227, 2
  %vm248 = vcmp.lt.s32.totalorder %v227, 3
  %vm249 = vcmp.lt.s32.totalorder %v227, 4
  %v250 = vsel %vm246, %v230, %v233
  %v251 = vsel %vm249, %v239, 2102212464
  %v252 = vsel %vm248, %v236, %v251
  %v253 = vsel %vm247, %v250, %v252
  %v254 = vsel %vm246, %v233, %v236
  %v255 = vsel %vm249, %v242, 920167782
  %v256 = vsel %vm248, %v239, %v255
  %v257 = vsel %vm247, %v254, %v256
  %v258 = vsel %vm246, %v236, %v239
  %v259 = vsel %vm249, %v245, 1326507024
  %v260 = vsel %vm248, %v242, %v259
  %v261 = vsel %vm247, %v258, %v260
  %v262 = vshll.u32 %v222, 8
  %v263 = vand.u32 %v262, 65535
  %v264 = vshrl.u32 %v262, 16
  %v265 = vand.u32 %v261, 65535
  %v266 = vshrl.u32 %v261, 16
  %v267 = vmul.u32 %v263, %v265
  %v268 = vmul.u32 %v263, %v266
  %v269 = vmul.u32 %v264, %v265
  %v270 = vmul.u32 %v264, %v266
  %v271 = vshll.u32 %v268, 16
  %v272 = vshrl.u32 %v268, 16
  %v273 = vshll.u32 %v269, 16
  %v274 = vshrl.u32 %v269, 16
  %vm275 = vc.u32 %v267, %v271
  %v276 = vsel %vm275, 1, 0
  %v277 = vadd.s32 %v267, %v271
  %v278 = vadd.s32 %v270, %v276
  %vm279 = vc.u32 %v277, %v273
  %v280 = vsel %vm279, 1, 0
  %v281 = vadd.s32 %v277, %v273
  %v282 = vadd.s32 %v278, %v280
  %v283 = vadd.s32 %v282, %v272
  %v284 = vadd.s32 %v283, %v274
  %v285 = vand.u32 %v262, 65535
  %v286 = vshrl.u32 %v262, 16
  %v287 = vand.u32 %v257, 65535
  %v288 = vshrl.u32 %v257, 16
  %v289 = vmul.u32 %v285, %v287
  %v290 = vmul.u32 %v285, %v288
  %v291 = vmul.u32 %v286, %v287
  %v292 = vmul.u32 %v286, %v288
  %v293 = vshll.u32 %v290, 16
  %v294 = vshrl.u32 %v290, 16
  %v295 = vshll.u32 %v291, 16
  %v296 = vshrl.u32 %v291, 16
  %vm297 = vc.u32 %v289, %v293
  %v298 = vsel %vm297, 1, 0
  %v299 = vadd.s32 %v289, %v293
  %v300 = vadd.s32 %v292, %v298
  %vm301 = vc.u32 %v299, %v295
  %v302 = vsel %vm301, 1, 0
  %v303 = vadd.s32 %v299, %v295
  %v304 = vadd.s32 %v300, %v302
  %v305 = vadd.s32 %v304, %v294
  %v306 = vadd.s32 %v305, %v296
  %v307 = vmul.u32 %v262, %v253
  %v308 = vadd.s32 %v284, %v303
  %vm309 = vc.u32 %v284, %v303
  %v310 = vadd.s32 %v306, 1
  %v311 = vsel %vm309, %v310, %v306
  %v312 = vadd.s32 %v307, %v311
  %v313 = vadd.s32 %v312, 536870912
  %v314 = vshrl.u32 %v313, 30
  %v315 = vshll.u32 %v314, 30
  %v316 = vsub.s32 %v312, %v315
  %vm317 = vcmp.lt.s32.totalorder %v316, 0
  %v318 = vsub.s32 0, %v316
  %v319 = vsel %vm317, %v318, %v316
  %v320 = vclz %v319
  %v321 = vsub.s32 %v320, 2
  %vm322 = vcmp.gt.s32.totalorder 0, %v321
  %v323 = vsel %vm322, 0, %v321
  %v324 = vsub.s32 32, %v323
  %v325 = vshll.u32 %v316, %v323
  %v326 = vshrl.u32 %v308, %v324
  %v327 = vor.u32 %v325, %v326
  %v328 = vsub.s32 4294967266, %v323
  %v329 = vadd.s32 %v328, 127
  %v330 = vshll.u32 %v329, 23
  %v331 = vor.u32 4788187, %v330
  %v332 = vand.u32 2147483647, %v331
  %v334 = vcvt.s32.f32 %v327
  %v335 = vmul.f32 %v334, %v332
  %v336 = vxor.u32 %v335, 2147483648
  %v337 = vsel %vm216, %v336, %v335
  %v338 = vsub.s32 4, %v314
  %v339 = vsel %vm216, %v338, %v314
  %v340 = vsel %vm215, %v39, %v337
  %v341 = vsel %vm215, 0, %v339
  %v342 = vmul.f32 %v340, %v340
  %v343 = vmul.f32 %v342, -0.001358992
  %v344 = vadd.f32 %v343, 0.041655596
  %v345 = vmul.f32 %v342, %v344
  %v346 = vadd.f32 %v345, -0.4999988
  %v347 = vmul.f32 %v342, %v346
  %v348 = vadd.f32 1.0, %v347
  %v349 = vmul.f32 %v340, %v340
  %v350 = vmul.f32 %v349, -0.00019511016
  %v351 = vadd.f32 %v350, 0.008332121
  %v352 = vmul.f32 %v349, %v351
  %v353 = vadd.f32 %v352, -0.16666654
  %v354 = vmul.f32 %v349, %v353
  %v355 = vadd.f32 %v354, 1.0
  %v356 = vmul.f32 %v355, %v340
  %vm357 = vweird.f32 %v39
  %v358 = vand.u32 %v341, 3
  %vm359 = vcmp.lt.s32.totalorder %v358, 2
  %vm360 = vcmp.eq.s32.totalorder %v358, 0
  %v361 = vxor.u32 %v356, 2147483648
  %v362 = vsel %vm360, %v348, %v361
  %vm363 = vcmp.eq.s32.totalorder %v358, 2
  %v364 = vxor.u32 %v348, 2147483648
  %v365 = vsel %vm363, %v364, %v356
  %v366 = vsel %vm359, %v362, %v365
  %v367 = vsel %vm357, nan, %v366
  %v368 = vand.u32 2147483647, %v49
  %vm369 = vcmp.le.f32.partialorder %v368, 0.7853982
  %vm370 = vcmp.lt.s32.totalorder %v49, 0
  %v371 = vand.u32 %v49, 2139095040
  %v372 = vshrl.u32 %v371, 23
  %v373 = vsub.s32 %v372, 127
  %v374 = vand.u32 2147483647, %v49
  %v375 = vand.u32 %v374, 8388607
  %v376 = vor.u32 %v375, 8388608
  %v377 = vsub.s32 0, %v376
  %v378 = vadd.s32 %v373, 1
  %vm379 = vcmp.gt.s32.totalorder %v378, 0
  %v380 = vsel %vm379, %v378, 0
  %v381 = vshrl.u32 %v380, 5
  %v382 = vand.u32 %v380, 31
  %v383 = vsub.s32 32, %v382
  %v384 = vshrl.u32 683565275, %v383
  %v385 = vshll.u32 683565275, %v382
  %v386 = vshrl.u32 2475754826, %v383
  %v387 = vor.u32 %v385, %v386
  %v388 = vshll.u32 2475754826, %v382
  %v389 = vshrl.u32 2131351028, %v383
  %v390 = vor.u32 %v388, %v389
  %v391 = vshll.u32 2131351028, %v382
  %v392 = vshrl.u32 2102212464, %v383
  %v393 = vor.u32 %v391, %v392
  %v394 = vshll.u32 2102212464, %v382
  %v395 = vshrl.u32 920167782, %v383
  %v396 = vor.u32 %v394, %v395
  %v397 = vshll.u32 920167782, %v382
  %v398 = vshrl.u32 1326507024, %v383
  %v399 = vor.u32 %v397, %v398
  %vm400 = vcmp.lt.s32.totalorder %v381, 1
  %vm401 = vcmp.lt.s32.totalorder %v381, 2
  %vm402 = vcmp.lt.s32.totalorder %v381, 3
  %vm403 = vcmp.lt.s32.totalorder %v381, 4
  %v404 = vsel %vm400, %v384, %v387
  %v405 = vsel %vm403, %v393, 2102212464
  %v406 = vsel %vm402, %v390, %v405
  %v407 = vsel %vm401, %v404, %v406
  %v408 = vsel %vm400, %v387, %v390
  %v409 = vsel %vm403, %v396, 920167782
  %v410 = vsel %vm402, %v393, %v409
  %v411 = vsel %vm401, %v408, %v410
  %v412 = vsel %vm400, %v390, %v393
  %v413 = vsel %vm403, %v399, 1326507024
  %v414 = vsel %vm402, %v396, %v413
  %v415 = vsel %vm401, %v412, %v414
  %v416 = vshll.u32 %v376, 8
  %v417 = vand.u32 %v416, 65535
  %v418 = vshrl.u32 %v416, 16
  %v419 = vand.u32 %v415, 65535
  %v420 = vshrl.u32 %v415, 16
  %v421 = vmul.u32 %v417, %v419
  %v422 = vmul.u32 %v417, %v420
  %v423 = vmul.u32 %v418, %v419
  %v424 = vmul.u32 %v418, %v420
  %v425 = vshll.u32 %v422, 16
  %v426 = vshrl.u32 %v422, 16
  %v427 = vshll.u32 %v423, 16
  %v428 = vshrl.u32 %v423, 16
  %vm429 = vc.u32 %v421, %v425
  %v430 = vsel %vm429, 1, 0
  %v431 = vadd.s32 %v421, %v425
  %v432 = vadd.s32 %v424, %v430
  %vm433 = vc.u32 %v431, %v427
  %v434 = vsel %vm433, 1, 0
  %v435 = vadd.s32 %v431, %v427
  %v436 = vadd.s32 %v432, %v434
  %v437 = vadd.s32 %v436, %v426
  %v438 = vadd.s32 %v437, %v428
  %v439 = vand.u32 %v416, 65535
  %v440 = vshrl.u32 %v416, 16
  %v441 = vand.u32 %v411, 65535
  %v442 = vshrl.u32 %v411, 16
  %v443 = vmul.u32 %v439, %v441
  %v444 = vmul.u32 %v439, %v442
  %v445 = vmul.u32 %v440, %v441
  %v446 = vmul.u32 %v440, %v442
  %v447 = vshll.u32 %v444, 16
  %v448 = vshrl.u32 %v444, 16
  %v449 = vshll.u32 %v445, 16
  %v450 = vshrl.u32 %v445, 16
  %vm451 = vc.u32 %v443, %v447
  %v452 = vsel %vm451, 1, 0
  %v453 = vadd.s32 %v443, %v447
  %v454 = vadd.s32 %v446, %v452
  %vm455 = vc.u32 %v453, %v449
  %v456 = vsel %vm455, 1, 0
  %v457 = vadd.s32 %v453, %v449
  %v458 = vadd.s32 %v454, %v456
  %v459 = vadd.s32 %v458, %v448
  %v460 = vadd.s32 %v459, %v450
  %v461 = vmul.u32 %v416, %v407
  %v462 = vadd.s32 %v438, %v457
  %vm463 = vc.u32 %v438, %v457
  %v464 = vadd.s32 %v460, 1
  %v465 = vsel %vm463, %v464, %v460
  %v466 = vadd.s32 %v461, %v465
  %v467 = vadd.s32 %v466, 536870912
  %v468 = vshrl.u32 %v467, 30
  %v469 = vshll.u32 %v468, 30
  %v470 = vsub.s32 %v466, %v469
  %vm471 = vcmp.lt.s32.totalorder %v470, 0
  %v472 = vsub.s32 0, %v470
  %v473 = vsel %vm471, %v472, %v470
  %v474 = vclz %v473
  %v475 = vsub.s32 %v474, 2
  %vm476 = vcmp.gt.s32.totalorder 0, %v475
  %v477 = vsel %vm476, 0, %v475
  %v478 = vsub.s32 32, %v477
  %v479 = vshll.u32 %v470, %v477
  %v480 = vshrl.u32 %v462, %v478
  %v481 = vor.u32 %v479, %v480
  %v482 = vsub.s32 4294967266, %v477
  %v483 = vadd.s32 %v482, 127
  %v484 = vshll.u32 %v483, 23
  %v485 = vor.u32 4788187, %v484
  %v486 = vand.u32 2147483647, %v485
  %v488 = vcvt.s32.f32 %v481
  %v489 = vmul.f32 %v488, %v486
  %v490 = vxor.u32 %v489, 2147483648
  %v491 = vsel %vm370, %v490, %v489
  %v492 = vsub.s32 4, %v468
  %v493 = vsel %vm370, %v492, %v468
  %v494 = vsel %vm369, %v49, %v491
  %v495 = vsel %vm369, 0, %v493
  %v496 = vmul.f32 %v494, %v494
  %v497 = vmul.f32 %v496, -0.001358992
  %v498 = vadd.f32 %v497, 0.041655596
  %v499 = vmul.f32 %v496, %v498
  %v500 = vadd.f32 %v499, -0.4999988
  %v501 = vmul.f32 %v496, %v500
  %v502 = vadd.f32 1.0, %v501
  %v503 = vmul.f32 %v494, %v494
  %v504 = vmul.f32 %v503, -0.00019511016
  %v505 = vadd.f32 %v504, 0.008332121
  %v506 = vmul.f32 %v503, %v505
  %v507 = vadd.f32 %v506, -0.16666654
  %v508 = vmul.f32 %v503, %v507
  %v509 = vadd.f32 %v508, 1.0
  %v510 = vmul.f32 %v509, %v494
  %vm511 = vweird.f32 %v49
  %v512 = vand.u32 %v495, 3
  %vm513 = vcmp.lt.s32.totalorder %v512, 2
  %vm514 = vcmp.eq.s32.totalorder %v512, 0
  %v515 = vxor.u32 %v510, 2147483648
  %v516 = vsel %vm514, %v502, %v515
  %vm517 = vcmp.eq.s32.totalorder %v512, 2
  %v518 = vxor.u32 %v502, 2147483648
  %v519 = vsel %vm517, %v518, %v510
  %v520 = vsel %vm513, %v516, %v519
  %v521 = vsel %vm511, nan, %v520
  %v522 = vand.u32 2147483647, %v59
  %vm523 = vcmp.le.f32.partialorder %v522, 0.7853982
  %vm524 = vcmp.lt.s32.totalorder %v59, 0
  %v525 = vand.u32 %v59, 2139095040
  %v526 = vshrl.u32 %v525, 23
  %v527 = vsub.s32 %v526, 127
  %v528 = vand.u32 2147483647, %v59
  %v529 = vand.u32 %v528, 8388607
  %v530 = vor.u32 %v529, 8388608
  %v531 = vsub.s32 0, %v530
  %v532 = vadd.s32 %v527, 1
  %vm533 = vcmp.gt.s32.totalorder %v532, 0
  %v534 = vsel %vm533, %v532, 0
  %v535 = vshrl.u32 %v534, 5
  %v536 = vand.u32 %v534, 31
  %v537 = vsub.s32 32, %v536
  %v538 = vshrl.u32 683565275, %v537
  %v539 = vshll.u32 683565275, %v536
  %v540 = vshrl.u32 2475754826, %v537
  %v541 = vor.u32 %v539, %v540
  %v542 = vshll.u32 2475754826, %v536
  %v543 = vshrl.u32 2131351028, %v537
  %v544 = vor.u32 %v542, %v543
  %v545 = vshll.u32 2131351028, %v536
  %v546 = vshrl.u32 2102212464, %v537
  %v547 = vor.u32 %v545, %v546
  %v548 = vshll.u32 2102212464, %v536
  %v549 = vshrl.u32 920167782, %v537
  %v550 = vor.u32 %v548, %v549
  %v551 = vshll.u32 920167782, %v536
  %v552 = vshrl.u32 1326507024, %v537
  %v553 = vor.u32 %v551, %v552
  %vm554 = vcmp.lt.s32.totalorder %v535, 1
  %vm555 = vcmp.lt.s32.totalorder %v535, 2
  %vm556 = vcmp.lt.s32.totalorder %v535, 3
  %vm557 = vcmp.lt.s32.totalorder %v535, 4
  %v558 = vsel %vm554, %v538, %v541
  %v559 = vsel %vm557, %v547, 2102212464
  %v560 = vsel %vm556, %v544, %v559
  %v561 = vsel %vm555, %v558, %v560
  %v562 = vsel %vm554, %v541, %v544
  %v563 = vsel %vm557, %v550, 920167782
  %v564 = vsel %vm556, %v547, %v563
  %v565 = vsel %vm555, %v562, %v564
  %v566 = vsel %vm554, %v544, %v547
  %v567 = vsel %vm557, %v553, 1326507024
  %v568 = vsel %vm556, %v550, %v567
  %v569 = vsel %vm555, %v566, %v568
  %v570 = vshll.u32 %v530, 8
  %v571 = vand.u32 %v570, 65535
  %v572 = vshrl.u32 %v570, 16
  %v573 = vand.u32 %v569, 65535
  %v574 = vshrl.u32 %v569, 16
  %v575 = vmul.u32 %v571, %v573
  %v576 = vmul.u32 %v571, %v574
  %v577 = vmul.u32 %v572, %v573
  %v578 = vmul.u32 %v572, %v574
  %v579 = vshll.u32 %v576, 16
  %v580 = vshrl.u32 %v576, 16
  %v581 = vshll.u32 %v577, 16
  %v582 = vshrl.u32 %v577, 16
  %vm583 = vc.u32 %v575, %v579
  %v584 = vsel %vm583, 1, 0
  %v585 = vadd.s32 %v575, %v579
  %v586 = vadd.s32 %v578, %v584
  %vm587 = vc.u32 %v585, %v581
  %v588 = vsel %vm587, 1, 0
  %v589 = vadd.s32 %v585, %v581
  %v590 = vadd.s32 %v586, %v588
  %v591 = vadd.s32 %v590, %v580
  %v592 = vadd.s32 %v591, %v582
  %v593 = vand.u32 %v570, 65535
  %v594 = vshrl.u32 %v570, 16
  %v595 = vand.u32 %v565, 65535
  %v596 = vshrl.u32 %v565, 16
  %v597 = vmul.u32 %v593, %v595
  %v598 = vmul.u32 %v593, %v596
  %v599 = vmul.u32 %v594, %v595
  %v600 = vmul.u32 %v594, %v596
  %v601 = vshll.u32 %v598, 16
  %v602 = vshrl.u32 %v598, 16
  %v603 = vshll.u32 %v599, 16
  %v604 = vshrl.u32 %v599, 16
  %vm605 = vc.u32 %v597, %v601
  %v606 = vsel %vm605, 1, 0
  %v607 = vadd.s32 %v597, %v601
  %v608 = vadd.s32 %v600, %v606
  %vm609 = vc.u32 %v607, %v603
  %v610 = vsel %vm609, 1, 0
  %v611 = vadd.s32 %v607, %v603
  %v612 = vadd.s32 %v608, %v610
  %v613 = vadd.s32 %v612, %v602
  %v614 = vadd.s32 %v613, %v604
  %v615 = vmul.u32 %v570, %v561
  %v616 = vadd.s32 %v592, %v611
  %vm617 = vc.u32 %v592, %v611
  %v618 = vadd.s32 %v614, 1
  %v619 = vsel %vm617, %v618, %v614
  %v620 = vadd.s32 %v615, %v619
  %v621 = vadd.s32 %v620, 536870912
  %v622 = vshrl.u32 %v621, 30
  %v623 = vshll.u32 %v622, 30
  %v624 = vsub.s32 %v620, %v623
  %vm625 = vcmp.lt.s32.totalorder %v624, 0
  %v626 = vsub.s32 0, %v624
  %v627 = vsel %vm625, %v626, %v624
  %v628 = vclz %v627
  %v629 = vsub.s32 %v628, 2
  %vm630 = vcmp.gt.s32.totalorder 0, %v629
  %v631 = vsel %vm630, 0, %v629
  %v632 = vsub.s32 32, %v631
  %v633 = vshll.u32 %v624, %v631
  %v634 = vshrl.u32 %v616, %v632
  %v635 = vor.u32 %v633, %v634
  %v636 = vsub.s32 4294967266, %v631
  %v637 = vadd.s32 %v636, 127
  %v638 = vshll.u32 %v637, 23
  %v639 = vor.u32 4788187, %v638
  %v640 = vand.u32 2147483647, %v639
  %v642 = vcvt.s32.f32 %v635
  %v643 = vmul.f32 %v642, %v640
  %v644 = vxor.u32 %v643, 2147483648
  %v645 = vsel %vm524, %v644, %v643
  %v646 = vsub.s32 4, %v622
  %v647 = vsel %vm524, %v646, %v622
  %v648 = vsel %vm523, %v59, %v645
  %v649 = vsel %vm523, 0, %v647
  %v650 = vmul.f32 %v648, %v648
  %v651 = vmul.f32 %v650, -0.001358992
  %v652 = vadd.f32 %v651, 0.041655596
  %v653 = vmul.f32 %v650, %v652
  %v654 = vadd.f32 %v653, -0.4999988
  %v655 = vmul.f32 %v650, %v654
  %v656 = vadd.f32 1.0, %v655
  %v657 = vmul.f32 %v648, %v648
  %v658 = vmul.f32 %v657, -0.00019511016
  %v659 = vadd.f32 %v658, 0.008332121
  %v660 = vmul.f32 %v657, %v659
  %v661 = vadd.f32 %v660, -0.16666654
  %v662 = vmul.f32 %v657, %v661
  %v663 = vadd.f32 %v662, 1.0
  %v664 = vmul.f32 %v663, %v648
  %vm665 = vweird.f32 %v59
  %v666 = vand.u32 %v649, 3
  %vm667 = vcmp.lt.s32.totalorder %v666, 2
  %vm668 = vcmp.eq.s32.totalorder %v666, 0
  %v669 = vxor.u32 %v664, 2147483648
  %v670 = vsel %vm668, %v656, %v669
  %vm671 = vcmp.eq.s32.totalorder %v666, 2
  %v672 = vxor.u32 %v656, 2147483648
  %v673 = vsel %vm671, %v672, %v664
  %v674 = vsel %vm667, %v670, %v673
  %v675 = vsel %vm665, nan, %v674
  %v676 = vand.u32 2147483647, %v29
  %vm677 = vcmp.le.f32.partialorder %v676, 0.7853982
  %vm678 = vcmp.lt.s32.totalorder %v29, 0
  %v679 = vand.u32 %v29, 2139095040
  %v680 = vshrl.u32 %v679, 23
  %v681 = vsub.s32 %v680, 127
  %v682 = vand.u32 2147483647, %v29
  %v683 = vand.u32 %v682, 8388607
  %v684 = vor.u32 %v683, 8388608
  %v685 = vsub.s32 0, %v684
  %v686 = vadd.s32 %v681, 1
  %vm687 = vcmp.gt.s32.totalorder %v686, 0
  %v688 = vsel %vm687, %v686, 0
  %v689 = vshrl.u32 %v688, 5
  %v690 = vand.u32 %v688, 31
  %v691 = vsub.s32 32, %v690
  %v692 = vshrl.u32 683565275, %v691
  %v693 = vshll.u32 683565275, %v690
  %v694 = vshrl.u32 2475754826, %v691
  %v695 = vor.u32 %v693, %v694
  %v696 = vshll.u32 2475754826, %v690
  %v697 = vshrl.u32 2131351028, %v691
  %v698 = vor.u32 %v696, %v697
  %v699 = vshll.u32 2131351028, %v690
  %v700 = vshrl.u32 2102212464, %v691
  %v701 = vor.u32 %v699, %v700
  %v702 = vshll.u32 2102212464, %v690
  %v703 = vshrl.u32 920167782, %v691
  %v704 = vor.u32 %v702, %v703
  %v705 = vshll.u32 920167782, %v690
  %v706 = vshrl.u32 1326507024, %v691
  %v707 = vor.u32 %v705, %v706
  %vm708 = vcmp.lt.s32.totalorder %v689, 1
  %vm709 = vcmp.lt.s32.totalorder %v689, 2
  %vm710 = vcmp.lt.s32.totalorder %v689, 3
  %vm711 = vcmp.lt.s32.totalorder %v689, 4
  %v712 = vsel %vm708, %v692, %v695
  %v713 = vsel %vm711, %v701, 2102212464
  %v714 = vsel %vm710, %v698, %v713
  %v715 = vsel %vm709, %v712, %v714
  %v716 = vsel %vm708, %v695, %v698
  %v717 = vsel %vm711, %v704, 920167782
  %v718 = vsel %vm710, %v701, %v717
  %v719 = vsel %vm709, %v716, %v718
  %v720 = vsel %vm708, %v698, %v701
  %v721 = vsel %vm711, %v707, 1326507024
  %v722 = vsel %vm710, %v704, %v721
  %v723 = vsel %vm709, %v720, %v722
  %v724 = vshll.u32 %v684, 8
  %v725 = vand.u32 %v724, 65535
  %v726 = vshrl.u32 %v724, 16
  %v727 = vand.u32 %v723, 65535
  %v728 = vshrl.u32 %v723, 16
  %v729 = vmul.u32 %v725, %v727
  %v730 = vmul.u32 %v725, %v728
  %v731 = vmul.u32 %v726, %v727
  %v732 = vmul.u32 %v726, %v728
  %v733 = vshll.u32 %v730, 16
  %v734 = vshrl.u32 %v730, 16
  %v735 = vshll.u32 %v731, 16
  %v736 = vshrl.u32 %v731, 16
  %vm737 = vc.u32 %v729, %v733
  %v738 = vsel %vm737, 1, 0
  %v739 = vadd.s32 %v729, %v733
  %v740 = vadd.s32 %v732, %v738
  %vm741 = vc.u32 %v739, %v735
  %v742 = vsel %vm741, 1, 0
  %v743 = vadd.s32 %v739, %v735
  %v744 = vadd.s32 %v740, %v742
  %v745 = vadd.s32 %v744, %v734
  %v746 = vadd.s32 %v745, %v736
  %v747 = vand.u32 %v724, 65535
  %v748 = vshrl.u32 %v724, 16
  %v749 = vand.u32 %v719, 65535
  %v750 = vshrl.u32 %v719, 16
  %v751 = vmul.u32 %v747, %v749
  %v752 = vmul.u32 %v747, %v750
  %v753 = vmul.u32 %v748, %v749
  %v754 = vmul.u32 %v748, %v750
  %v755 = vshll.u32 %v752, 16
  %v756 = vshrl.u32 %v752, 16
  %v757 = vshll.u32 %v753, 16
  %v758 = vshrl.u32 %v753, 16
  %vm759 = vc.u32 %v751, %v755
  %v760 = vsel %vm759, 1, 0
  %v761 = vadd.s32 %v751, %v755
  %v762 = vadd.s32 %v754, %v760
  %vm763 = vc.u32 %v761, %v757
  %v764 = vsel %vm763, 1, 0
  %v765 = vadd.s32 %v761, %v757
  %v766 = vadd.s32 %v762, %v764
  %v767 = vadd.s32 %v766, %v756
  %v768 = vadd.s32 %v767, %v758
  %v769 = vmul.u32 %v724, %v715
  %v770 = vadd.s32 %v746, %v765
  %vm771 = vc.u32 %v746, %v765
  %v772 = vadd.s32 %v768, 1
  %v773 = vsel %vm771, %v772, %v768
  %v774 = vadd.s32 %v769, %v773
  %v775 = vadd.s32 %v774, 536870912
  %v776 = vshrl.u32 %v775, 30
  %v777 = vshll.u32 %v776, 30
  %v778 = vsub.s32 %v774, %v777
  %vm779 = vcmp.lt.s32.totalorder %v778, 0
  %v780 = vsub.s32 0, %v778
  %v781 = vsel %vm779, %v780, %v778
  %v782 = vclz %v781
  %v783 = vsub.s32 %v782, 2
  %vm784 = vcmp.gt.s32.totalorder 0, %v783
  %v785 = vsel %vm784, 0, %v783
  %v786 = vsub.s32 32, %v785
  %v787 = vshll.u32 %v778, %v785
  %v788 = vshrl.u32 %v770, %v786
  %v789 = vor.u32 %v787, %v788
  %v790 = vsub.s32 4294967266, %v785
  %v791 = vadd.s32 %v790, 127
  %v792 = vshll.u32 %v791, 23
  %v793 = vor.u32 4788187, %v792
  %v794 = vand.u32 2147483647, %v793
  %v796 = vcvt.s32.f32 %v789
  %v797 = vmul.f32 %v796, %v794
  %v798 = vxor.u32 %v797, 2147483648
  %v799 = vsel %vm678, %v798, %v797
  %v800 = vsub.s32 4, %v776
  %v801 = vsel %vm678, %v800, %v776
  %v802 = vsel %vm677, %v29, %v799
  %v803 = vsel %vm677, 0, %v801
  %v804 = vmul.f32 %v802, %v802
  %v805 = vmul.f32 %v804, -0.001358992
  %v806 = vadd.f32 %v805, 0.041655596
  %v807 = vmul.f32 %v804, %v806
  %v808 = vadd.f32 %v807, -0.4999988
  %v809 = vmul.f32 %v804, %v808
  %v810 = vadd.f32 1.0, %v809
  %v811 = vmul.f32 %v802, %v802
  %v812 = vmul.f32 %v811, -0.00019511016
  %v813 = vadd.f32 %v812, 0.008332121
  %v814 = vmul.f32 %v811, %v813
  %v815 = vadd.f32 %v814, -0.16666654
  %v816 = vmul.f32 %v811, %v815
  %v817 = vadd.f32 %v816, 1.0
  %v818 = vmul.f32 %v817, %v802
  %vm819 = vweird.f32 %v29
  %v820 = vadd.s32 %v803, 3
  %v821 = vand.u32 %v820, 3
  %vm822 = vcmp.lt.s32.totalorder %v821, 2
  %vm823 = vcmp.eq.s32.totalorder %v821, 0
  %v824 = vxor.u32 %v818, 2147483648
  %v825 = vsel %vm823, %v810, %v824
  %vm826 = vcmp.eq.s32.totalorder %v821, 2
  %v827 = vxor.u32 %v810, 2147483648
  %v828 = vsel %vm826, %v827, %v818
  %v829 = vsel %vm822, %v825, %v828
  %v830 = vsel %vm819, nan, %v829
  %v831 = vand.u32 2147483647, %v39
  %vm832 = vcmp.le.f32.partialorder %v831, 0.7853982
  %vm833 = vcmp.lt.s32.totalorder %v39, 0
  %v834 = vand.u32 %v39, 2139095040
  %v835 = vshrl.u32 %v834, 23
  %v836 = vsub.s32 %v835, 127
  %v837 = vand.u32 2147483647, %v39
  %v838 = vand.u32 %v837, 8388607
  %v839 = vor.u32 %v838, 8388608
  %v840 = vsub.s32 0, %v839
  %v841 = vadd.s32 %v836, 1
  %vm842 = vcmp.gt.s32.totalorder %v841, 0
  %v843 = vsel %vm842, %v841, 0
  %v844 = vshrl.u32 %v843, 5
  %v845 = vand.u32 %v843, 31
  %v846 = vsub.s32 32, %v845
  %v847 = vshrl.u32 683565275, %v846
  %v848 = vshll.u32 683565275, %v845
  %v849 = vshrl.u32 2475754826, %v846
  %v850 = vor.u32 %v848, %v849
  %v851 = vshll.u32 2475754826, %v845
  %v852 = vshrl.u32 2131351028, %v846
  %v853 = vor.u32 %v851, %v852
  %v854 = vshll.u32 2131351028, %v845
  %v855 = vshrl.u32 2102212464, %v846
  %v856 = vor.u32 %v854, %v855
  %v857 = vshll.u32 2102212464, %v845
  %v858 = vshrl.u32 920167782, %v846
  %v859 = vor.u32 %v857, %v858
  %v860 = vshll.u32 920167782, %v845
  %v861 = vshrl.u32 1326507024, %v846
  %v862 = vor.u32 %v860, %v861
  %vm863 = vcmp.lt.s32.totalorder %v844, 1
  %vm864 = vcmp.lt.s32.totalorder %v844, 2
  %vm865 = vcmp.lt.s32.totalorder %v844, 3
  %vm866 = vcmp.lt.s32.totalorder %v844, 4
  %v867 = vsel %vm863, %v847, %v850
  %v868 = vsel %vm866, %v856, 2102212464
  %v869 = vsel %vm865, %v853, %v868
  %v870 = vsel %vm864, %v867, %v869
  %v871 = vsel %vm863, %v850, %v853
  %v872 = vsel %vm866, %v859, 920167782
  %v873 = vsel %vm865, %v856, %v872
  %v874 = vsel %vm864, %v871, %v873
  %v875 = vsel %vm863, %v853, %v856
  %v876 = vsel %vm866, %v862, 1326507024
  %v877 = vsel %vm865, %v859, %v876
  %v878 = vsel %vm864, %v875, %v877
  %v879 = vshll.u32 %v839, 8
  %v880 = vand.u32 %v879, 65535
  %v881 = vshrl.u32 %v879, 16
  %v882 = vand.u32 %v878, 65535
  %v883 = vshrl.u32 %v878, 16
  %v884 = vmul.u32 %v880, %v882
  %v885 = vmul.u32 %v880, %v883
  %v886 = vmul.u32 %v881, %v882
  %v887 = vmul.u32 %v881, %v883
  %v888 = vshll.u32 %v885, 16
  %v889 = vshrl.u32 %v885, 16
  %v890 = vshll.u32 %v886, 16
  %v891 = vshrl.u32 %v886, 16
  %vm892 = vc.u32 %v884, %v888
  %v893 = vsel %vm892, 1, 0
  %v894 = vadd.s32 %v884, %v888
  %v895 = vadd.s32 %v887, %v893
  %vm896 = vc.u32 %v894, %v890
  %v897 = vsel %vm896, 1, 0
  %v898 = vadd.s32 %v894, %v890
  %v899 = vadd.s32 %v895, %v897
  %v900 = vadd.s32 %v899, %v889
  %v901 = vadd.s32 %v900, %v891
  %v902 = vand.u32 %v879, 65535
  %v903 = vshrl.u32 %v879, 16
  %v904 = vand.u32 %v874, 65535
  %v905 = vshrl.u32 %v874, 16
  %v906 = vmul.u32 %v902, %v904
  %v907 = vmul.u32 %v902, %v905
  %v908 = vmul.u32 %v903, %v904
  %v909 = vmul.u32 %v903, %v905
  %v910 = vshll.u32 %v907, 16
  %v911 = vshrl.u32 %v907, 16
  %v912 = vshll.u32 %v908, 16
  %v913 = vshrl.u32 %v908, 16
  %vm914 = vc.u32 %v906, %v910
  %v915 = vsel %vm914, 1, 0
  %v916 = vadd.s32 %v906, %v910
  %v917 = vadd.s32 %v909, %v915
  %vm918 = vc.u32 %v916, %v912
  %v919 = vsel %vm918, 1, 0
  %v920 = vadd.s32 %v916, %v912
  %v921 = vadd.s32 %v917, %v919
  %v922 = vadd.s32 %v921, %v911
  %v923 = vadd.s32 %v922, %v913
  %v924 = vmul.u32 %v879, %v870
  %v925 = vadd.s32 %v901, %v920
  %vm926 = vc.u32 %v901, %v920
  %v927 = vadd.s32 %v923, 1
  %v928 = vsel %vm926, %v927, %v923
  %v929 = vadd.s32 %v924, %v928
  %v930 = vadd.s32 %v929, 536870912
  %v931 = vshrl.u32 %v930, 30
  %v932 = vshll.u32 %v931, 30
  %v933 = vsub.s32 %v929, %v932
  %vm934 = vcmp.lt.s32.totalorder %v933, 0
  %v935 = vsub.s32 0, %v933
  %v936 = vsel %vm934, %v935, %v933
  %v937 = vclz %v936
  %v938 = vsub.s32 %v937, 2
  %vm939 = vcmp.gt.s32.totalorder 0, %v938
  %v940 = vsel %vm939, 0, %v938
  %v941 = vsub.s32 32, %v940
  %v942 = vshll.u32 %v933, %v940
  %v943 = vshrl.u32 %v925, %v941
  %v944 = vor.u32 %v942, %v943
  %v945 = vsub.s32 4294967266, %v940
  %v946 = vadd.s32 %v945, 127
  %v947 = vshll.u32 %v946, 23
  %v948 = vor.u32 4788187, %v947
  %v949 = vand.u32 2147483647, %v948
  %v951 = vcvt.s32.f32 %v944
  %v952 = vmul.f32 %v951, %v949
  %v953 = vxor.u32 %v952, 2147483648
  %v954 = vsel %vm833, %v953, %v952
  %v955 = vsub.s32 4, %v931
  %v956 = vsel %vm833, %v955, %v931
  %v957 = vsel %vm832, %v39, %v954
  %v958 = vsel %vm832, 0, %v956
  %v959 = vmul.f32 %v957, %v957
  %v960 = vmul.f32 %v959, -0.001358992
  %v961 = vadd.f32 %v960, 0.041655596
  %v962 = vmul.f32 %v959, %v961
  %v963 = vadd.f32 %v962, -0.4999988
  %v964 = vmul.f32 %v959, %v963
  %v965 = vadd.f32 1.0, %v964
  %v966 = vmul.f32 %v957, %v957
  %v967 = vmul.f32 %v966, -0.00019511016
  %v968 = vadd.f32 %v967, 0.008332121
  %v969 = vmul.f32 %v966, %v968
  %v970 = vadd.f32 %v969, -0.16666654
  %v971 = vmul.f32 %v966, %v970
  %v972 = vadd.f32 %v971, 1.0
  %v973 = vmul.f32 %v972, %v957
  %vm974 = vweird.f32 %v39
  %v975 = vadd.s32 %v958, 3
  %v976 = vand.u32 %v975, 3
  %vm977 = vcmp.lt.s32.totalorder %v976, 2
  %vm978 = vcmp.eq.s32.totalorder %v976, 0
  %v979 = vxor.u32 %v973, 2147483648
  %v980 = vsel %vm978, %v965, %v979
  %vm981 = vcmp.eq.s32.totalorder %v976, 2
  %v982 = vxor.u32 %v965, 2147483648
  %v983 = vsel %vm981, %v982, %v973
  %v984 = vsel %vm977, %v980, %v983
  %v985 = vsel %vm974, nan, %v984
  %v986 = vand.u32 2147483647, %v49
  %vm987 = vcmp.le.f32.partialorder %v986, 0.7853982
  %vm988 = vcmp.lt.s32.totalorder %v49, 0
  %v989 = vand.u32 %v49, 2139095040
  %v990 = vshrl.u32 %v989, 23
  %v991 = vsub.s32 %v990, 127
  %v992 = vand.u32 2147483647, %v49
  %v993 = vand.u32 %v992, 8388607
  %v994 = vor.u32 %v993, 8388608
  %v995 = vsub.s32 0, %v994
  %v996 = vadd.s32 %v991, 1
  %vm997 = vcmp.gt.s32.totalorder %v996, 0
  %v998 = vsel %vm997, %v996, 0
  %v999 = vshrl.u32 %v998, 5
  %v1000 = vand.u32 %v998, 31
  %v1001 = vsub.s32 32, %v1000
  %v1002 = vshrl.u32 683565275, %v1001
  %v1003 = vshll.u32 683565275, %v1000
  %v1004 = vshrl.u32 2475754826, %v1001
  %v1005 = vor.u32 %v1003, %v1004
  %v1006 = vshll.u32 2475754826, %v1000
  %v1007 = vshrl.u32 2131351028, %v1001
  %v1008 = vor.u32 %v1006, %v1007
  %v1009 = vshll.u32 2131351028, %v1000
  %v1010 = vshrl.u32 2102212464, %v1001
  %v1011 = vor.u32 %v1009, %v1010
  %v1012 = vshll.u32 2102212464, %v1000
  %v1013 = vshrl.u32 920167782, %v1001
  %v1014 = vor.u32 %v1012, %v1013
  %v1015 = vshll.u32 920167782, %v1000
  %v1016 = vshrl.u32 1326507024, %v1001
  %v1017 = vor.u32 %v1015, %v1016
  %vm1018 = vcmp.lt.s32.totalorder %v999, 1
  %vm1019 = vcmp.lt.s32.totalorder %v999, 2
  %vm1020 = vcmp.lt.s32.totalorder %v999, 3
  %vm1021 = vcmp.lt.s32.totalorder %v999, 4
  %v1022 = vsel %vm1018, %v1002, %v1005
  %v1023 = vsel %vm1021, %v1011, 2102212464
  %v1024 = vsel %vm1020, %v1008, %v1023
  %v1025 = vsel %vm1019, %v1022, %v1024
  %v1026 = vsel %vm1018, %v1005, %v1008
  %v1027 = vsel %vm1021, %v1014, 920167782
  %v1028 = vsel %vm1020, %v1011, %v1027
  %v1029 = vsel %vm1019, %v1026, %v1028
  %v1030 = vsel %vm1018, %v1008, %v1011
  %v1031 = vsel %vm1021, %v1017, 1326507024
  %v1032 = vsel %vm1020, %v1014, %v1031
  %v1033 = vsel %vm1019, %v1030, %v1032
  %v1034 = vshll.u32 %v994, 8
  %v1035 = vand.u32 %v1034, 65535
  %v1036 = vshrl.u32 %v1034, 16
  %v1037 = vand.u32 %v1033, 65535
  %v1038 = vshrl.u32 %v1033, 16
  %v1039 = vmul.u32 %v1035, %v1037
  %v1040 = vmul.u32 %v1035, %v1038
  %v1041 = vmul.u32 %v1036, %v1037
  %v1042 = vmul.u32 %v1036, %v1038
  %v1043 = vshll.u32 %v1040, 16
  %v1044 = vshrl.u32 %v1040, 16
  %v1045 = vshll.u32 %v1041, 16
  %v1046 = vshrl.u32 %v1041, 16
  %vm1047 = vc.u32 %v1039, %v1043
  %v1048 = vsel %vm1047, 1, 0
  %v1049 = vadd.s32 %v1039, %v1043
  %v1050 = vadd.s32 %v1042, %v1048
  %vm1051 = vc.u32 %v1049, %v1045
  %v1052 = vsel %vm1051, 1, 0
  %v1053 = vadd.s32 %v1049, %v1045
  %v1054 = vadd.s32 %v1050, %v1052
  %v1055 = vadd.s32 %v1054, %v1044
  %v1056 = vadd.s32 %v1055, %v1046
  %v1057 = vand.u32 %v1034, 65535
  %v1058 = vshrl.u32 %v1034, 16
  %v1059 = vand.u32 %v1029, 65535
  %v1060 = vshrl.u32 %v1029, 16
  %v1061 = vmul.u32 %v1057, %v1059
  %v1062 = vmul.u32 %v1057, %v1060
  %v1063 = vmul.u32 %v1058, %v1059
  %v1064 = vmul.u32 %v1058, %v1060
  %v1065 = vshll.u32 %v1062, 16
  %v1066 = vshrl.u32 %v1062, 16
  %v1067 = vshll.u32 %v1063, 16
  %v1068 = vshrl.u32 %v1063, 16
  %vm1069 = vc.u32 %v1061, %v1065
  %v1070 = vsel %vm1069, 1, 0
  %v1071 = vadd.s32 %v1061, %v1065
  %v1072 = vadd.s32 %v1064, %v1070
  %vm1073 = vc.u32 %v1071, %v1067
  %v1074 = vsel %vm1073, 1, 0
  %v1075 = vadd.s32 %v1071, %v1067
  %v1076 = vadd.s32 %v1072, %v1074
  %v1077 = vadd.s32 %v1076, %v1066
  %v1078 = vadd.s32 %v1077, %v1068
  %v1079 = vmul.u32 %v1034, %v1025
  %v1080 = vadd.s32 %v1056, %v1075
  %vm1081 = vc.u32 %v1056, %v1075
  %v1082 = vadd.s32 %v1078, 1
  %v1083 = vsel %vm1081, %v1082, %v1078
  %v1084 = vadd.s32 %v1079, %v1083
  %v1085 = vadd.s32 %v1084, 536870912
  %v1086 = vshrl.u32 %v1085, 30
  %v1087 = vshll.u32 %v1086, 30
  %v1088 = vsub.s32 %v1084, %v1087
  %vm1089 = vcmp.lt.s32.totalorder %v1088, 0
  %v1090 = vsub.s32 0, %v1088
  %v1091 = vsel %vm1089, %v1090, %v1088
  %v1092 = vclz %v1091
  %v1093 = vsub.s32 %v1092, 2
  %vm1094 = vcmp.gt.s32.totalorder 0, %v1093
  %v1095 = vsel %vm1094, 0, %v1093
  %v1096 = vsub.s32 32, %v1095
  %v1097 = vshll.u32 %v1088, %v1095
  %v1098 = vshrl.u32 %v1080, %v1096
  %v1099 = vor.u32 %v1097, %v1098
  %v1100 = vsub.s32 4294967266, %v1095
  %v1101 = vadd.s32 %v1100, 127
  %v1102 = vshll.u32 %v1101, 23
  %v1103 = vor.u32 4788187, %v1102
  %v1104 = vand.u32 2147483647, %v1103
  %v1106 = vcvt.s32.f32 %v1099
  %v1107 = vmul.f32 %v1106, %v1104
  %v1108 = vxor.u32 %v1107, 2147483648
  %v1109 = vsel %vm988, %v1108, %v1107
  %v1110 = vsub.s32 4, %v1086
  %v1111 = vsel %vm988, %v1110, %v1086
  %v1112 = vsel %vm987, %v49, %v1109
  %v1113 = vsel %vm987, 0, %v1111
  %v1114 = vmul.f32 %v1112, %v1112
  %v1115 = vmul.f32 %v1114, -0.001358992
  %v1116 = vadd.f32 %v1115, 0.041655596
  %v1117 = vmul.f32 %v1114, %v1116
  %v1118 = vadd.f32 %v1117, -0.4999988
  %v1119 = vmul.f32 %v1114, %v1118
  %v1120 = vadd.f32 1.0, %v1119
  %v1121 = vmul.f32 %v1112, %v1112
  %v1122 = vmul.f32 %v1121, -0.00019511016
  %v1123 = vadd.f32 %v1122, 0.008332121
  %v1124 = vmul.f32 %v1121, %v1123
  %v1125 = vadd.f32 %v1124, -0.16666654
  %v1126 = vmul.f32 %v1121, %v1125
  %v1127 = vadd.f32 %v1126, 1.0
  %v1128 = vmul.f32 %v1127, %v1112
  %vm1129 = vweird.f32 %v49
  %v1130 = vadd.s32 %v1113, 3
  %v1131 = vand.u32 %v1130, 3
  %vm1132 = vcmp.lt.s32.totalorder %v1131, 2
  %vm1133 = vcmp.eq.s32.totalorder %v1131, 0
  %v1134 = vxor.u32 %v1128, 2147483648
  %v1135 = vsel %vm1133, %v1120, %v1134
  %vm1136 = vcmp.eq.s32.totalorder %v1131, 2
  %v1137 = vxor.u32 %v1120, 2147483648
  %v1138 = vsel %vm1136, %v1137, %v1128
  %v1139 = vsel %vm1132, %v1135, %v1138
  %v1140 = vsel %vm1129, nan, %v1139
  %v1141 = vand.u32 2147483647, %v59
  %vm1142 = vcmp.le.f32.partialorder %v1141, 0.7853982
  %vm1143 = vcmp.lt.s32.totalorder %v59, 0
  %v1144 = vand.u32 %v59, 2139095040
  %v1145 = vshrl.u32 %v1144, 23
  %v1146 = vsub.s32 %v1145, 127
  %v1147 = vand.u32 2147483647, %v59
  %v1148 = vand.u32 %v1147, 8388607
  %v1149 = vor.u32 %v1148, 8388608
  %v1150 = vsub.s32 0, %v1149
  %v1151 = vadd.s32 %v1146, 1
  %vm1152 = vcmp.gt.s32.totalorder %v1151, 0
  %v1153 = vsel %vm1152, %v1151, 0
  %v1154 = vshrl.u32 %v1153, 5
  %v1155 = vand.u32 %v1153, 31
  %v1156 = vsub.s32 32, %v1155
  %v1157 = vshrl.u32 683565275, %v1156
  %v1158 = vshll.u32 683565275, %v1155
  %v1159 = vshrl.u32 2475754826, %v1156
  %v1160 = vor.u32 %v1158, %v1159
  %v1161 = vshll.u32 2475754826, %v1155
  %v1162 = vshrl.u32 2131351028, %v1156
  %v1163 = vor.u32 %v1161, %v1162
  %v1164 = vshll.u32 2131351028, %v1155
  %v1165 = vshrl.u32 2102212464, %v1156
  %v1166 = vor.u32 %v1164, %v1165
  %v1167 = vshll.u32 2102212464, %v1155
  %v1168 = vshrl.u32 920167782, %v1156
  %v1169 = vor.u32 %v1167, %v1168
  %v1170 = vshll.u32 920167782, %v1155
  %v1171 = vshrl.u32 1326507024, %v1156
  %v1172 = vor.u32 %v1170, %v1171
  %vm1173 = vcmp.lt.s32.totalorder %v1154, 1
  %vm1174 = vcmp.lt.s32.totalorder %v1154, 2
  %vm1175 = vcmp.lt.s32.totalorder %v1154, 3
  %vm1176 = vcmp.lt.s32.totalorder %v1154, 4
  %v1177 = vsel %vm1173, %v1157, %v1160
  %v1178 = vsel %vm1176, %v1166, 2102212464
  %v1179 = vsel %vm1175, %v1163, %v1178
  %v1180 = vsel %vm1174, %v1177, %v1179
  %v1181 = vsel %vm1173, %v1160, %v1163
  %v1182 = vsel %vm1176, %v1169, 920167782
  %v1183 = vsel %vm1175, %v1166, %v1182
  %v1184 = vsel %vm1174, %v1181, %v1183
  %v1185 = vsel %vm1173, %v1163, %v1166
  %v1186 = vsel %vm1176, %v1172, 1326507024
  %v1187 = vsel %vm1175, %v1169, %v1186
  %v1188 = vsel %vm1174, %v1185, %v1187
  %v1189 = vshll.u32 %v1149, 8
  %v1190 = vand.u32 %v1189, 65535
  %v1191 = vshrl.u32 %v1189, 16
  %v1192 = vand.u32 %v1188, 65535
  %v1193 = vshrl.u32 %v1188, 16
  %v1194 = vmul.u32 %v1190, %v1192
  %v1195 = vmul.u32 %v1190, %v1193
  %v1196 = vmul.u32 %v1191, %v1192
  %v1197 = vmul.u32 %v1191, %v1193
  %v1198 = vshll.u32 %v1195, 16
  %v1199 = vshrl.u32 %v1195, 16
  %v1200 = vshll.u32 %v1196, 16
  %v1201 = vshrl.u32 %v1196, 16
  %vm1202 = vc.u32 %v1194, %v1198
  %v1203 = vsel %vm1202, 1, 0
  %v1204 = vadd.s32 %v1194, %v1198
  %v1205 = vadd.s32 %v1197, %v1203
  %vm1206 = vc.u32 %v1204, %v1200
  %v1207 = vsel %vm1206, 1, 0
  %v1208 = vadd.s32 %v1204, %v1200
  %v1209 = vadd.s32 %v1205, %v1207
  %v1210 = vadd.s32 %v1209, %v1199
  %v1211 = vadd.s32 %v1210, %v1201
  %v1212 = vand.u32 %v1189, 65535
  %v1213 = vshrl.u32 %v1189, 16
  %v1214 = vand.u32 %v1184, 65535
  %v1215 = vshrl.u32 %v1184, 16
  %v1216 = vmul.u32 %v1212, %v1214
  %v1217 = vmul.u32 %v1212, %v1215
  %v1218 = vmul.u32 %v1213, %v1214
  %v1219 = vmul.u32 %v1213, %v1215
  %v1220 = vshll.u32 %v1217, 16
  %v1221 = vshrl.u32 %v1217, 16
  %v1222 = vshll.u32 %v1218, 16
  %v1223 = vshrl.u32 %v1218, 16
  %vm1224 = vc.u32 %v1216, %v1220
  %v1225 = vsel %vm1224, 1, 0
  %v1226 = vadd.s32 %v1216, %v1220
  %v1227 = vadd.s32 %v1219, %v1225
  %vm1228 = vc.u32 %v1226, %v1222
  %v1229 = vsel %vm1228, 1, 0
  %v1230 = vadd.s32 %v1226, %v1222
  %v1231 = vadd.s32 %v1227, %v1229
  %v1232 = vadd.s32 %v1231, %v1221
  %v1233 = vadd.s32 %v1232, %v1223
  %v1234 = vmul.u32 %v1189, %v1180
  %v1235 = vadd.s32 %v1211, %v1230
  %vm1236 = vc.u32 %v1211, %v1230
  %v1237 = vadd.s32 %v1233, 1
  %v1238 = vsel %vm1236, %v1237, %v1233
  %v1239 = vadd.s32 %v1234, %v1238
  %v1240 = vadd.s32 %v1239, 536870912
  %v1241 = vshrl.u32 %v1240, 30
  %v1242 = vshll.u32 %v1241, 30
  %v1243 = vsub.s32 %v1239, %v1242
  %vm1244 = vcmp.lt.s32.totalorder %v1243, 0
  %v1245 = vsub.s32 0, %v1243
  %v1246 = vsel %vm1244, %v1245, %v1243
  %v1247 = vclz %v1246
  %v1248 = vsub.s32 %v1247, 2
  %vm1249 = vcmp.gt.s32.totalorder 0, %v1248
  %v1250 = vsel %vm1249, 0, %v1248
  %v1251 = vsub.s32 32, %v1250
  %v1252 = vshll.u32 %v1243, %v1250
  %v1253 = vshrl.u32 %v1235, %v1251
  %v1254 = vor.u32 %v1252, %v1253
  %v1255 = vsub.s32 4294967266, %v1250
  %v1256 = vadd.s32 %v1255, 127
  %v1257 = vshll.u32 %v1256, 23
  %v1258 = vor.u32 4788187, %v1257
  %v1259 = vand.u32 2147483647, %v1258
  %v1261 = vcvt.s32.f32 %v1254
  %v1262 = vmul.f32 %v1261, %v1259
  %v1263 = vxor.u32 %v1262, 2147483648
  %v1264 = vsel %vm1143, %v1263, %v1262
  %v1265 = vsub.s32 4, %v1241
  %v1266 = vsel %vm1143, %v1265, %v1241
  %v1267 = vsel %vm1142, %v59, %v1264
  %v1268 = vsel %vm1142, 0, %v1266
  %v1269 = vmul.f32 %v1267, %v1267
  %v1270 = vmul.f32 %v1269, -0.001358992
  %v1271 = vadd.f32 %v1270, 0.041655596
  %v1272 = vmul.f32 %v1269, %v1271
  %v1273 = vadd.f32 %v1272, -0.4999988
  %v1274 = vmul.f32 %v1269, %v1273
  %v1275 = vadd.f32 1.0, %v1274
  %v1276 = vmul.f32 %v1267, %v1267
  %v1277 = vmul.f32 %v1276, -0.00019511016
  %v1278 = vadd.f32 %v1277, 0.008332121
  %v1279 = vmul.f32 %v1276, %v1278
  %v1280 = vadd.f32 %v1279, -0.16666654
  %v1281 = vmul.f32 %v1276, %v1280
  %v1282 = vadd.f32 %v1281, 1.0
  %v1283 = vmul.f32 %v1282, %v1267
  %vm1284 = vweird.f32 %v59
  %v1285 = vadd.s32 %v1268, 3
  %v1286 = vand.u32 %v1285, 3
  %vm1287 = vcmp.lt.s32.totalorder %v1286, 2
  %vm1288 = vcmp.eq.s32.totalorder %v1286, 0
  %v1289 = vxor.u32 %v1283, 2147483648
  %v1290 = vsel %vm1288, %v1275, %v1289
  %vm1291 = vcmp.eq.s32.totalorder %v1286, 2
  %v1292 = vxor.u32 %v1275, 2147483648
  %v1293 = vsel %vm1291, %v1292, %v1283
  %v1294 = vsel %vm1287, %v1290, %v1293
  %v1295 = vsel %vm1284, nan, %v1294
  %s1296 = sld [smem:[#allocation3 + $0xc]]
  %s1297 = sld [smem:[#allocation3 + $0xf]]
  %v1298 = vstv %s1297
  %v1299 = vmul.f32 %v1298, %v213
  %v1300 = vstv %s1296
  %v1301 = vadd.f32 %v1300, %v1299
  %s1302 = sld [smem:[#allocation3 + $0x12]]
  %v1303 = vstv %s1302
  %v1304 = vmul.f32 %v1303, %v830
  %v1305 = vadd.f32 %v1301, %v1304
  %s1306 = sld [smem:[#allocation3 + $0xd]]
  %s1307 = sld [smem:[#allocation3 + $0x10]]
  %v1308 = vstv %s1307
  %v1309 = vmul.f32 %v1308, %v213
  %v1310 = vstv %s1306
  %v1311 = vadd.f32 %v1310, %v1309
  %s1312 = sld [smem:[#allocation3 + $0x13]]
  %v1313 = vstv %s1312
  %v1314 = vmul.f32 %v1313, %v830
  %v1315 = vadd.f32 %v1311, %v1314
  %s1316 = sld [smem:[#allocation3 + $0xe]]
  %s1317 = sld [smem:[#allocation3 + $0x11]]
  %v1318 = vstv %s1317
  %v1319 = vmul.f32 %v1318, %v213
  %v1320 = vstv %s1316
  %v1321 = vadd.f32 %v1320, %v1319
  %s1322 = sld [smem:[#allocation3 + $0x14]]
  %v1323 = vstv %s1322
  %v1324 = vmul.f32 %v1323, %v830
  %v1325 = vadd.f32 %v1321, %v1324
  %v1326 = vmul.f32 %v1315, %v367
  %v1327 = vadd.f32 %v1305, %v1326
  %v1328 = vmul.f32 %v1325, %v985
  %v1329 = vadd.f32 %v1327, %v1328
  %s1330 = sld [smem:[#allocation3 + $0x15]]
  %s1331 = sld [smem:[#allocation3 + $0x18]]
  %v1332 = vstv %s1331
  %v1333 = vmul.f32 %v1332, %v521
  %v1334 = vstv %s1330
  %v1335 = vadd.f32 %v1334, %v1333
  %s1336 = sld [smem:[#allocation3 + $0x1b]]
  %v1337 = vstv %s1336
  %v1338 = vmul.f32 %v1337, %v1140
  %v1339 = vadd.f32 %v1335, %v1338
  %s1340 = sld [smem:[#allocation3 + $0x16]]
  %s1341 = sld [smem:[#allocation3 + $0x19]]
  %v1342 = vstv %s1341
  %v1343 = vmul.f32 %v1342, %v521
  %v1344 = vstv %s1340
  %v1345 = vadd.f32 %v1344, %v1343
  %s1346 = sld [smem:[#allocation3 + $0x1c]]
  %v1347 = vstv %s1346
  %v1348 = vmul.f32 %v1347, %v1140
  %v1349 = vadd.f32 %v1345, %v1348
  %s1350 = sld [smem:[#allocation3 + $0x17]]
  %s1351 = sld [smem:[#allocation3 + $0x1a]]
  %v1352 = vstv %s1351
  %v1353 = vmul.f32 %v1352, %v521
  %v1354 = vstv %s1350
  %v1355 = vadd.f32 %v1354, %v1353
  %s1356 = sld [smem:[#allocation3 + $0x1d]]
  %v1357 = vstv %s1356
  %v1358 = vmul.f32 %v1357, %v1140
  %v1359 = vadd.f32 %v1355, %v1358
  %v1360 = vmul.f32 %v1349, %v675
  %v1361 = vadd.f32 %v1339, %v1360
  %v1362 = vmul.f32 %v1359, %v1295
  %v1363 = vadd.f32 %v1361, %v1362
  %v1364 = vadd.f32 %v1329, %v1363
  %v1365 = vmul.f32 %v1364, 0.5
  %v1366 = vtanh.pop %v1365
  %v1367 = vmul.f32 %v1366, 0.5
  %v1368 = vadd.f32 %v1367, 0.5
  %s1369 = scalar_lea.vmem %s2, 8
  %1370 = vst [vmem:[%s1369] sm:$0xff] %v1368
  %v1371 = vsub.f32 1.0, %v1368
  %1372 = vst [vmem:[%s2] sm:$0xff] %v1371
  // Predicated region
  $region6: #{hybrid_forward.1} parent=0 // pred_check
    _
  $region7: #{hybrid_forward.1} parent=0 // pred_check_branch
    %1374 = sbr.rel (0) target = $region9
  $region8: #{hybrid_forward.1} parent=0 // pred_region
    _
  $region9: #{hybrid_forward.1} parent=0 // pred_fallthru
    _
  // Predicated region
  $region10: #{hybrid_forward.1} parent=0 // pred_check
    _
  $region11: #{hybrid_forward.1} parent=0 // pred_check_branch
    %1376 = sbr.rel (0) target = $region13
  $region12: #{hybrid_forward.1} parent=0 // pred_region
    _
  $region13: #{hybrid_forward.1} parent=0 // pred_fallthru
    _

</llo_original>
